<compile_context>
chip_gen: v7x
topology: tpu7x:2x2x1
jax: 0.10.0
libtpu: 0.0.40
codegen_flags: <defaults>
</compile_context>

<pallas_src>
import functools

import jax
import jax.numpy as jnp
from jax import lax
from jax.experimental import pallas as pl
from jax.experimental.pallas import tpu as pltpu


def _taps_w(x, k, pad, W, w_coord):
    """k taps of a 1-D conv along W, stacked on the sublane axis (tap-major).

    x: (Cr, H*W).  Tap t is x shifted by (t - pad) columns; the per-lane mask
    zeroes values that bled in from the neighbouring row of the flattened
    layout (and the image edge).  Returns (k*Cr, H*W).
    """
    Cr, HW = x.shape
    zeros = jnp.zeros((Cr, pad), x.dtype)
    xp = jnp.concatenate([zeros, x, zeros], axis=1)        # (Cr, HW + 2*pad)
    taps = []
    for t in range(k):
        d = t - pad
        win = xp[:, pad + d: pad + d + HW]                 # x[:, hw + d]
        valid = jnp.logical_and(w_coord + d >= 0, w_coord + d < W)
        taps.append(jnp.where(valid, win, 0.0))
    return jnp.concatenate(taps, axis=0)


def _taps_h(x, k, pad, W):
    """k taps of a 1-D conv along H, stacked on the sublane axis (tap-major).

    In the flattened (Cr, H*W) layout a shift of d rows is a shift of d*W
    lanes and the only boundary is the global one, so padding the flattened
    axis with pad*W zeros each side is exact (no mask needed).
    """
    Cr, HW = x.shape
    off = pad * W
    zeros = jnp.zeros((Cr, off), x.dtype)
    xp = jnp.concatenate([zeros, x, zeros], axis=1)        # (Cr, HW + 2*pad*W)
    taps = []
    for t in range(k):
        d = (t - pad) * W
        taps.append(xp[:, off + d: off + d + HW])
    return jnp.concatenate(taps, axis=0)


def gcm_kernel(x_ref, w1a_ref, w1b_ref, w2a_ref, w2b_ref, o_ref, *, k, pad, W):
    HW = x_ref.shape[-1]
    x = x_ref[0]                                           # (Cin, H*W) f32
    # Per-lane column coordinate, hoisted once and reused by both W-dir convs.
    w_coord = lax.broadcasted_iota(jnp.int32, (1, HW), 1) % W

    # NOTE: on v6e/v7x the matmul operands could be cast to bfloat16 here
    # (keeping preferred_element_type=f32) for ~2x MXU rate and half the VMEM
    # traffic at ~1e-2 abs error; kept in f32 to match the module exactly.

    # branch 1: Conv(1,k) along W (Cin->C), then Conv(k,1) along H (C->C).
    y1 = jnp.dot(w1a_ref[...], _taps_w(x, k, pad, W, w_coord),
                 preferred_element_type=jnp.float32)       # (C, H*W)
    o_ref[0] = jnp.dot(w1b_ref[...], _taps_h(y1, k, pad, W),
                       preferred_element_type=jnp.float32)

    # branch 2: Conv(k,1) along H (Cin->C), then Conv(1,k) along W (C->C),
    # accumulated straight into the output block so only one branch is live.
    y2 = jnp.dot(w2a_ref[...], _taps_h(x, k, pad, W),
                 preferred_element_type=jnp.float32)       # (C, H*W)
    o_ref[0] += jnp.dot(w2b_ref[...], _taps_w(y2, k, pad, W, w_coord),
                        preferred_element_type=jnp.float32)


def gcm_forward(x_nchw, w1a, w1b, w2a, w2b, k):
    """x: (N, Cin, H, W); weights: (out_ch, in_ch, tap) — PyTorch conv weights
    with the singleton spatial dim squeezed out."""
    pad = (k - 1) // 2
    N, Cin, H, W = x_nchw.shape
    C = w1a.shape[0]
    HW = H * W

    x = x_nchw.reshape(N, Cin, HW).astype(jnp.float32)     # free reshape, no transpose

    def to_2d(w):  # (Cout, Ci, k) -> (Cout, k*Ci), tap-major columns
        cout, ci, kk = w.shape
        return jnp.transpose(w, (0, 2, 1)).reshape(cout, kk * ci).astype(jnp.float32)

    w1a2, w1b2, w2a2, w2b2 = (to_2d(w) for w in (w1a, w1b, w2a, w2b))

    flops = 4 * N * HW * C * k * (Cin + C)                 # 2 branches x 2 convs
    bytes_accessed = 4 * (x.size + N * C * HW
                          + w1a2.size + w1b2.size + w2a2.size + w2b2.size)

    # TODO(synk): for production-size H/W/Cin add an H-tiled grid axis with a
    # `pad`-row halo (needed to fit v7x's 64 MiB VMEM and to feed both
    # TensorCores when N is small).
    out = pl.pallas_call(
        functools.partial(gcm_kernel, k=k, pad=pad, W=W),
        out_shape=jax.ShapeDtypeStruct((N, C, HW), jnp.float32),
        grid_spec=pltpu.PrefetchScalarGridSpec(
            num_scalar_prefetch=0,
            grid=(N,),
            in_specs=[
                pl.BlockSpec((1, Cin, HW), lambda n: (n, 0, 0)),
                pl.BlockSpec((C, k * Cin), lambda n: (0, 0)),
                pl.BlockSpec((C, k * C), lambda n: (0, 0)),
                pl.BlockSpec((C, k * Cin), lambda n: (0, 0)),
                pl.BlockSpec((C, k * C), lambda n: (0, 0)),
            ],
            out_specs=pl.BlockSpec((1, C, HW), lambda n: (n, 0, 0)),
        ),
        compiler_params=pltpu.CompilerParams(
            dimension_semantics=("parallel",)),
        cost_estimate=pl.CostEstimate(flops=flops, transcendentals=0,
                                      bytes_accessed=bytes_accessed),
    )(x, w1a2, w1b2, w2a2, w2b2)

    return out.reshape(N, C, H, W)


# ---------------------------------------------------------------------------
# Plain-JAX reference (lax.conv, NCHW), used only for a correctness assertion.
# ---------------------------------------------------------------------------
def _ref_conv(x_nchw, w_tap, axis, pad):
    cout, cin, k = w_tap.shape
    if axis == 1:   # (1, k) conv along W
        rhs = w_tap.reshape(cout, cin, 1, k)
        padding = [(0, 0), (pad, pad)]
    else:           # (k, 1) conv along H
        rhs = w_tap.reshape(cout, cin, k, 1)
        padding = [(pad, pad), (0, 0)]
    return lax.conv_general_dilated(
        x_nchw.astype(jnp.float32), rhs.astype(jnp.float32),
        window_strides=(1, 1), padding=padding,
        dimension_numbers=('NCHW', 'OIHW', 'NCHW'))


def gcm_reference(x, w1a, w1b, w2a, w2b, k):
    pad = (k - 1) // 2
    b1 = _ref_conv(_ref_conv(x, w1a, 1, pad), w1b, 0, pad)
    b2 = _ref_conv(_ref_conv(x, w2a, 0, pad), w2b, 1, pad)
    return b1 + b2


if __name__ == "__main__":
    # Small shapes consistent with the module: N=2, in_channels=8, num_class=4,
    # H=W=16, odd k=7 (module default k=15 also works; 7 keeps compile fast).
    N, Cin, C, H, W, k = 2, 8, 4, 16, 16, 7

    key = jax.random.PRNGKey(0)
    ks = jax.random.split(key, 5)
    x = jax.random.normal(ks[0], (N, Cin, H, W), jnp.float32)
    scale = 0.1
    # Deterministic synthetic weights in PyTorch layout, spatial dim squeezed:
    # (out_ch, in_ch, tap).
    w1a = jax.random.normal(ks[1], (C, Cin, k), jnp.float32) * scale  # conv1[0]: (1,k)
    w1b = jax.random.normal(ks[2], (C, C, k), jnp.float32) * scale    # conv1[1]: (k,1)
    w2a = jax.random.normal(ks[3], (C, Cin, k), jnp.float32) * scale  # conv2[0]: (k,1)
    w2b = jax.random.normal(ks[4], (C, C, k), jnp.float32) * scale    # conv2[1]: (1,k)

    out = jax.block_until_ready(gcm_forward(x, w1a, w1b, w2a, w2b, k))
    assert out.shape == (N, C, H, W), out.shape

    ref = jax.block_until_ready(gcm_reference(x, w1a, w1b, w2a, w2b, k))
    max_err = float(jnp.max(jnp.abs(out - ref)))
    assert max_err < 1e-3, f"max abs error {max_err}"

    print("KERNEL_OK")
</pallas_src>

<mosaic_0001>
module attributes {stable_mosaic.version = 11 : i64} {
  func.func @gcm_kernel(%arg0: i32, %arg1: memref<1x8x256xf32, #tpu.memory_space<vmem>>, %arg2: memref<4x56xf32, #tpu.memory_space<vmem>>, %arg3: memref<4x28xf32, #tpu.memory_space<vmem>>, %arg4: memref<4x56xf32, #tpu.memory_space<vmem>>, %arg5: memref<4x28xf32, #tpu.memory_space<vmem>>, %arg6: memref<1x4x256xf32, #tpu.memory_space<vmem>>) attributes {dimension_semantics = [#tpu.dimension_semantics<parallel>], iteration_bounds = array<i64: 2>, scalar_prefetch = 0 : i64, scratch_operands = 0 : i64, tpu.core_type = #tpu.core_type<tc>, window_params = [{transform_indices = @transform_0, window_bounds = array<i64: 1, 8, 256>}, {pipeline_mode = #tpu.pipeline_mode<synchronous>, transform_indices = @transform_1, window_bounds = array<i64: 4, 56>}, {pipeline_mode = #tpu.pipeline_mode<synchronous>, transform_indices = @transform_2, window_bounds = array<i64: 4, 28>}, {pipeline_mode = #tpu.pipeline_mode<synchronous>, transform_indices = @transform_3, window_bounds = array<i64: 4, 56>}, {pipeline_mode = #tpu.pipeline_mode<synchronous>, transform_indices = @transform_4, window_bounds = array<i64: 4, 28>}, {transform_indices = @transform_5, window_bounds = array<i64: 1, 4, 256>}]} {
    %c0 = arith.constant 0 : index
    %c0_0 = arith.constant 0 : index
    %c0_1 = arith.constant 0 : index
    %0 = vector.load %arg1[%c0, %c0_0, %c0_1] : memref<1x8x256xf32, #tpu.memory_space<vmem>>, vector<1x8x256xf32>
    %1 = vector.shape_cast %0 : vector<1x8x256xf32> to vector<8x256xf32>
    %2 = tpu.iota {dimensions = array<i32: 1>} : vector<1x256xi32>
    %c16_i32 = arith.constant 16 : i32
    %c0_i32 = arith.constant 0 : i32
    %3 = arith.cmpi eq, %c16_i32, %c0_i32 : i32
    %c1_i32 = arith.constant 1 : i32
    %4 = arith.select %3, %c1_i32, %c16_i32 : i32
    %5 = vector.broadcast %4 : i32 to vector<1x256xi32>
    %6 = arith.remsi %2, %5 : vector<1x256xi32>
    %c0_i32_2 = arith.constant 0 : i32
    %7 = vector.broadcast %c0_i32_2 : i32 to vector<1x256xi32>
    %8 = arith.cmpi ne, %6, %7 : vector<1x256xi32>
    %c0_i32_3 = arith.constant 0 : i32
    %9 = vector.broadcast %c0_i32_3 : i32 to vector<1x256xi32>
    %10 = arith.cmpi slt, %6, %9 : vector<1x256xi32>
    %c0_i32_4 = arith.constant 0 : i32
    %11 = arith.cmpi slt, %4, %c0_i32_4 : i32
    %12 = vector.broadcast %11 : i1 to vector<1x256xi1>
    %13 = vector.broadcast %12 : vector<1x256xi1> to vector<1x256xi1>
    %14 = arith.xori %10, %13 : vector<1x256xi1>
    %15 = arith.andi %14, %8 : vector<1x256xi1>
    %16 = vector.broadcast %4 : i32 to vector<1x256xi32>
    %17 = arith.addi %6, %16 : vector<1x256xi32>
    %18 = arith.select %15, %17, %6 : vector<1x256xi1>, vector<1x256xi32>
    %c0_5 = arith.constant 0 : index
    %c0_6 = arith.constant 0 : index
    %19 = vector.load %arg2[%c0_5, %c0_6] : memref<4x56xf32, #tpu.memory_space<vmem>>, vector<4x56xf32>
    %cst = arith.constant 0.000000e+00 : f32
    %20 = vector.broadcast %cst : f32 to vector<8x3xf32>
    %21 = tpu.concatenate %20, %1, %20 in 1 : vector<8x3xf32>, vector<8x256xf32>, vector<8x3xf32> -> vector<8x262xf32>
    %22 = vector.extract_strided_slice %21 {offsets = [0, 0], sizes = [8, 256], strides = [1, 1]} : vector<8x262xf32> to vector<8x256xf32>
    %c-3_i32 = arith.constant -3 : i32
    %23 = vector.broadcast %c-3_i32 : i32 to vector<1x256xi32>
    %24 = arith.addi %18, %23 : vector<1x256xi32>
    %c0_i32_7 = arith.constant 0 : i32
    %25 = vector.broadcast %c0_i32_7 : i32 to vector<1x256xi32>
    %26 = arith.cmpi sge, %24, %25 : vector<1x256xi32>
    %c-3_i32_8 = arith.constant -3 : i32
    %27 = vector.broadcast %c-3_i32_8 : i32 to vector<1x256xi32>
    %28 = arith.addi %18, %27 : vector<1x256xi32>
    %c16_i32_9 = arith.constant 16 : i32
    %29 = vector.broadcast %c16_i32_9 : i32 to vector<1x256xi32>
    %30 = arith.cmpi slt, %28, %29 : vector<1x256xi32>
    %31 = arith.andi %26, %30 : vector<1x256xi1>
    %cst_10 = arith.constant 0.000000e+00 : f32
    %32 = vector.shape_cast %31 : vector<1x256xi1> to vector<1x256xi1>
    %33 = vector.broadcast %32 : vector<1x256xi1> to vector<8x256xi1>
    %34 = vector.broadcast %cst_10 : f32 to vector<8x256xf32>
    %35 = arith.select %33, %22, %34 : vector<8x256xi1>, vector<8x256xf32>
    %36 = vector.extract_strided_slice %21 {offsets = [0, 1], sizes = [8, 256], strides = [1, 1]} : vector<8x262xf32> to vector<8x256xf32>
    %c-2_i32 = arith.constant -2 : i32
    %37 = vector.broadcast %c-2_i32 : i32 to vector<1x256xi32>
    %38 = arith.addi %18, %37 : vector<1x256xi32>
    %c0_i32_11 = arith.constant 0 : i32
    %39 = vector.broadcast %c0_i32_11 : i32 to vector<1x256xi32>
    %40 = arith.cmpi sge, %38, %39 : vector<1x256xi32>
    %c-2_i32_12 = arith.constant -2 : i32
    %41 = vector.broadcast %c-2_i32_12 : i32 to vector<1x256xi32>
    %42 = arith.addi %18, %41 : vector<1x256xi32>
    %c16_i32_13 = arith.constant 16 : i32
    %43 = vector.broadcast %c16_i32_13 : i32 to vector<1x256xi32>
    %44 = arith.cmpi slt, %42, %43 : vector<1x256xi32>
    %45 = arith.andi %40, %44 : vector<1x256xi1>
    %cst_14 = arith.constant 0.000000e+00 : f32
    %46 = vector.shape_cast %45 : vector<1x256xi1> to vector<1x256xi1>
    %47 = vector.broadcast %46 : vector<1x256xi1> to vector<8x256xi1>
    %48 = vector.broadcast %cst_14 : f32 to vector<8x256xf32>
    %49 = arith.select %47, %36, %48 : vector<8x256xi1>, vector<8x256xf32>
    %50 = vector.extract_strided_slice %21 {offsets = [0, 2], sizes = [8, 256], strides = [1, 1]} : vector<8x262xf32> to vector<8x256xf32>
    %c-1_i32 = arith.constant -1 : i32
    %51 = vector.broadcast %c-1_i32 : i32 to vector<1x256xi32>
    %52 = arith.addi %18, %51 : vector<1x256xi32>
    %c0_i32_15 = arith.constant 0 : i32
    %53 = vector.broadcast %c0_i32_15 : i32 to vector<1x256xi32>
    %54 = arith.cmpi sge, %52, %53 : vector<1x256xi32>
    %c-1_i32_16 = arith.constant -1 : i32
    %55 = vector.broadcast %c-1_i32_16 : i32 to vector<1x256xi32>
    %56 = arith.addi %18, %55 : vector<1x256xi32>
    %c16_i32_17 = arith.constant 16 : i32
    %57 = vector.broadcast %c16_i32_17 : i32 to vector<1x256xi32>
    %58 = arith.cmpi slt, %56, %57 : vector<1x256xi32>
    %59 = arith.andi %54, %58 : vector<1x256xi1>
    %cst_18 = arith.constant 0.000000e+00 : f32
    %60 = vector.shape_cast %59 : vector<1x256xi1> to vector<1x256xi1>
    %61 = vector.broadcast %60 : vector<1x256xi1> to vector<8x256xi1>
    %62 = vector.broadcast %cst_18 : f32 to vector<8x256xf32>
    %63 = arith.select %61, %50, %62 : vector<8x256xi1>, vector<8x256xf32>
    %64 = vector.extract_strided_slice %21 {offsets = [0, 3], sizes = [8, 256], strides = [1, 1]} : vector<8x262xf32> to vector<8x256xf32>
    %c0_i32_19 = arith.constant 0 : i32
    %65 = vector.broadcast %c0_i32_19 : i32 to vector<1x256xi32>
    %66 = arith.addi %18, %65 : vector<1x256xi32>
    %c0_i32_20 = arith.constant 0 : i32
    %67 = vector.broadcast %c0_i32_20 : i32 to vector<1x256xi32>
    %68 = arith.cmpi sge, %66, %67 : vector<1x256xi32>
    %c0_i32_21 = arith.constant 0 : i32
    %69 = vector.broadcast %c0_i32_21 : i32 to vector<1x256xi32>
    %70 = arith.addi %18, %69 : vector<1x256xi32>
    %c16_i32_22 = arith.constant 16 : i32
    %71 = vector.broadcast %c16_i32_22 : i32 to vector<1x256xi32>
    %72 = arith.cmpi slt, %70, %71 : vector<1x256xi32>
    %73 = arith.andi %68, %72 : vector<1x256xi1>
    %cst_23 = arith.constant 0.000000e+00 : f32
    %74 = vector.shape_cast %73 : vector<1x256xi1> to vector<1x256xi1>
    %75 = vector.broadcast %74 : vector<1x256xi1> to vector<8x256xi1>
    %76 = vector.broadcast %cst_23 : f32 to vector<8x256xf32>
    %77 = arith.select %75, %64, %76 : vector<8x256xi1>, vector<8x256xf32>
    %78 = vector.extract_strided_slice %21 {offsets = [0, 4], sizes = [8, 256], strides = [1, 1]} : vector<8x262xf32> to vector<8x256xf32>
    %c1_i32_24 = arith.constant 1 : i32
    %79 = vector.broadcast %c1_i32_24 : i32 to vector<1x256xi32>
    %80 = arith.addi %18, %79 : vector<1x256xi32>
    %c0_i32_25 = arith.constant 0 : i32
    %81 = vector.broadcast %c0_i32_25 : i32 to vector<1x256xi32>
    %82 = arith.cmpi sge, %80, %81 : vector<1x256xi32>
    %c1_i32_26 = arith.constant 1 : i32
    %83 = vector.broadcast %c1_i32_26 : i32 to vector<1x256xi32>
    %84 = arith.addi %18, %83 : vector<1x256xi32>
    %c16_i32_27 = arith.constant 16 : i32
    %85 = vector.broadcast %c16_i32_27 : i32 to vector<1x256xi32>
    %86 = arith.cmpi slt, %84, %85 : vector<1x256xi32>
    %87 = arith.andi %82, %86 : vector<1x256xi1>
    %cst_28 = arith.constant 0.000000e+00 : f32
    %88 = vector.shape_cast %87 : vector<1x256xi1> to vector<1x256xi1>
    %89 = vector.broadcast %88 : vector<1x256xi1> to vector<8x256xi1>
    %90 = vector.broadcast %cst_28 : f32 to vector<8x256xf32>
    %91 = arith.select %89, %78, %90 : vector<8x256xi1>, vector<8x256xf32>
    %92 = vector.extract_strided_slice %21 {offsets = [0, 5], sizes = [8, 256], strides = [1, 1]} : vector<8x262xf32> to vector<8x256xf32>
    %c2_i32 = arith.constant 2 : i32
    %93 = vector.broadcast %c2_i32 : i32 to vector<1x256xi32>
    %94 = arith.addi %18, %93 : vector<1x256xi32>
    %c0_i32_29 = arith.constant 0 : i32
    %95 = vector.broadcast %c0_i32_29 : i32 to vector<1x256xi32>
    %96 = arith.cmpi sge, %94, %95 : vector<1x256xi32>
    %c2_i32_30 = arith.constant 2 : i32
    %97 = vector.broadcast %c2_i32_30 : i32 to vector<1x256xi32>
    %98 = arith.addi %18, %97 : vector<1x256xi32>
    %c16_i32_31 = arith.constant 16 : i32
    %99 = vector.broadcast %c16_i32_31 : i32 to vector<1x256xi32>
    %100 = arith.cmpi slt, %98, %99 : vector<1x256xi32>
    %101 = arith.andi %96, %100 : vector<1x256xi1>
    %cst_32 = arith.constant 0.000000e+00 : f32
    %102 = vector.shape_cast %101 : vector<1x256xi1> to vector<1x256xi1>
    %103 = vector.broadcast %102 : vector<1x256xi1> to vector<8x256xi1>
    %104 = vector.broadcast %cst_32 : f32 to vector<8x256xf32>
    %105 = arith.select %103, %92, %104 : vector<8x256xi1>, vector<8x256xf32>
    %106 = vector.extract_strided_slice %21 {offsets = [0, 6], sizes = [8, 256], strides = [1, 1]} : vector<8x262xf32> to vector<8x256xf32>
    %c3_i32 = arith.constant 3 : i32
    %107 = vector.broadcast %c3_i32 : i32 to vector<1x256xi32>
    %108 = arith.addi %18, %107 : vector<1x256xi32>
    %c0_i32_33 = arith.constant 0 : i32
    %109 = vector.broadcast %c0_i32_33 : i32 to vector<1x256xi32>
    %110 = arith.cmpi sge, %108, %109 : vector<1x256xi32>
    %c3_i32_34 = arith.constant 3 : i32
    %111 = vector.broadcast %c3_i32_34 : i32 to vector<1x256xi32>
    %112 = arith.addi %18, %111 : vector<1x256xi32>
    %c16_i32_35 = arith.constant 16 : i32
    %113 = vector.broadcast %c16_i32_35 : i32 to vector<1x256xi32>
    %114 = arith.cmpi slt, %112, %113 : vector<1x256xi32>
    %115 = arith.andi %110, %114 : vector<1x256xi1>
    %cst_36 = arith.constant 0.000000e+00 : f32
    %116 = vector.shape_cast %115 : vector<1x256xi1> to vector<1x256xi1>
    %117 = vector.broadcast %116 : vector<1x256xi1> to vector<8x256xi1>
    %118 = vector.broadcast %cst_36 : f32 to vector<8x256xf32>
    %119 = arith.select %117, %106, %118 : vector<8x256xi1>, vector<8x256xf32>
    %120 = tpu.concatenate %35, %49, %63, %77, %91, %105, %119 in 0 : vector<8x256xf32>, vector<8x256xf32>, vector<8x256xf32>, vector<8x256xf32>, vector<8x256xf32>, vector<8x256xf32>, vector<8x256xf32> -> vector<56x256xf32>
    %cst_37 = arith.constant dense<0.000000e+00> : vector<4x256xf32>
    %121 = tpu.matmul %19, %120, %cst_37 {dimension_numbers = #tpu.dot_dimension_numbers<[1], [0], [0], [1], [0, 0, 1, 1], [], []>} : vector<4x56xf32>, vector<56x256xf32>, vector<4x256xf32> -> vector<4x256xf32>
    %c0_38 = arith.constant 0 : index
    %c0_39 = arith.constant 0 : index
    %122 = vector.load %arg3[%c0_38, %c0_39] : memref<4x28xf32, #tpu.memory_space<vmem>>, vector<4x28xf32>
    %cst_40 = arith.constant 0.000000e+00 : f32
    %123 = vector.broadcast %cst_40 : f32 to vector<4x48xf32>
    %124 = tpu.concatenate %123, %121, %123 in 1 : vector<4x48xf32>, vector<4x256xf32>, vector<4x48xf32> -> vector<4x352xf32>
    %125 = vector.extract_strided_slice %124 {offsets = [0, 0], sizes = [4, 256], strides = [1, 1]} : vector<4x352xf32> to vector<4x256xf32>
    %126 = vector.extract_strided_slice %124 {offsets = [0, 16], sizes = [4, 256], strides = [1, 1]} : vector<4x352xf32> to vector<4x256xf32>
    %127 = vector.extract_strided_slice %124 {offsets = [0, 32], sizes = [4, 256], strides = [1, 1]} : vector<4x352xf32> to vector<4x256xf32>
    %128 = vector.extract_strided_slice %124 {offsets = [0, 48], sizes = [4, 256], strides = [1, 1]} : vector<4x352xf32> to vector<4x256xf32>
    %129 = vector.extract_strided_slice %124 {offsets = [0, 64], sizes = [4, 256], strides = [1, 1]} : vector<4x352xf32> to vector<4x256xf32>
    %130 = vector.extract_strided_slice %124 {offsets = [0, 80], sizes = [4, 256], strides = [1, 1]} : vector<4x352xf32> to vector<4x256xf32>
    %131 = vector.extract_strided_slice %124 {offsets = [0, 96], sizes = [4, 256], strides = [1, 1]} : vector<4x352xf32> to vector<4x256xf32>
    %132 = tpu.concatenate %125, %126, %127, %128, %129, %130, %131 in 0 : vector<4x256xf32>, vector<4x256xf32>, vector<4x256xf32>, vector<4x256xf32>, vector<4x256xf32>, vector<4x256xf32>, vector<4x256xf32> -> vector<28x256xf32>
    %cst_41 = arith.constant dense<0.000000e+00> : vector<4x256xf32>
    %133 = tpu.matmul %122, %132, %cst_41 {dimension_numbers = #tpu.dot_dimension_numbers<[1], [0], [0], [1], [0, 0, 1, 1], [], []>} : vector<4x28xf32>, vector<28x256xf32>, vector<4x256xf32> -> vector<4x256xf32>
    %c0_42 = arith.constant 0 : index
    %c0_43 = arith.constant 0 : index
    %c0_44 = arith.constant 0 : index
    %134 = vector.load %arg6[%c0_42, %c0_43, %c0_44] : memref<1x4x256xf32, #tpu.memory_space<vmem>>, vector<1x4x256xf32>
    %135 = vector.shape_cast %134 : vector<1x4x256xf32> to vector<4x256xf32>
    %136 = vector.shape_cast %133 : vector<4x256xf32> to vector<1x4x256xf32>
    tpu.vector_store %arg6[%c0_42, %c0_43, %c0_44], %136 {strides = array<i32>} : memref<1x4x256xf32, #tpu.memory_space<vmem>>, vector<1x4x256xf32>,
    %c0_45 = arith.constant 0 : index
    %c0_46 = arith.constant 0 : index
    %137 = vector.load %arg4[%c0_45, %c0_46] : memref<4x56xf32, #tpu.memory_space<vmem>>, vector<4x56xf32>
    %cst_47 = arith.constant 0.000000e+00 : f32
    %138 = vector.broadcast %cst_47 : f32 to vector<8x48xf32>
    %139 = tpu.concatenate %138, %1, %138 in 1 : vector<8x48xf32>, vector<8x256xf32>, vector<8x48xf32> -> vector<8x352xf32>
    %140 = vector.extract_strided_slice %139 {offsets = [0, 0], sizes = [8, 256], strides = [1, 1]} : vector<8x352xf32> to vector<8x256xf32>
    %141 = vector.extract_strided_slice %139 {offsets = [0, 16], sizes = [8, 256], strides = [1, 1]} : vector<8x352xf32> to vector<8x256xf32>
    %142 = vector.extract_strided_slice %139 {offsets = [0, 32], sizes = [8, 256], strides = [1, 1]} : vector<8x352xf32> to vector<8x256xf32>
    %143 = vector.extract_strided_slice %139 {offsets = [0, 48], sizes = [8, 256], strides = [1, 1]} : vector<8x352xf32> to vector<8x256xf32>
    %144 = vector.extract_strided_slice %139 {offsets = [0, 64], sizes = [8, 256], strides = [1, 1]} : vector<8x352xf32> to vector<8x256xf32>
    %145 = vector.extract_strided_slice %139 {offsets = [0, 80], sizes = [8, 256], strides = [1, 1]} : vector<8x352xf32> to vector<8x256xf32>
    %146 = vector.extract_strided_slice %139 {offsets = [0, 96], sizes = [8, 256], strides = [1, 1]} : vector<8x352xf32> to vector<8x256xf32>
    %147 = tpu.concatenate %140, %141, %142, %143, %144, %145, %146 in 0 : vector<8x256xf32>, vector<8x256xf32>, vector<8x256xf32>, vector<8x256xf32>, vector<8x256xf32>, vector<8x256xf32>, vector<8x256xf32> -> vector<56x256xf32>
    %cst_48 = arith.constant dense<0.000000e+00> : vector<4x256xf32>
    %148 = tpu.matmul %137, %147, %cst_48 {dimension_numbers = #tpu.dot_dimension_numbers<[1], [0], [0], [1], [0, 0, 1, 1], [], []>} : vector<4x56xf32>, vector<56x256xf32>, vector<4x256xf32> -> vector<4x256xf32>
    %c0_49 = arith.constant 0 : index
    %c0_50 = arith.constant 0 : index
    %c0_51 = arith.constant 0 : index
    %149 = vector.load %arg6[%c0_49, %c0_50, %c0_51] : memref<1x4x256xf32, #tpu.memory_space<vmem>>, vector<1x4x256xf32>
    %150 = vector.shape_cast %149 : vector<1x4x256xf32> to vector<4x256xf32>
    %c0_52 = arith.constant 0 : index
    %c0_53 = arith.constant 0 : index
    %151 = vector.load %arg5[%c0_52, %c0_53] : memref<4x28xf32, #tpu.memory_space<vmem>>, vector<4x28xf32>
    %cst_54 = arith.constant 0.000000e+00 : f32
    %152 = vector.broadcast %cst_54 : f32 to vector<4x3xf32>
    %153 = tpu.concatenate %152, %148, %152 in 1 : vector<4x3xf32>, vector<4x256xf32>, vector<4x3xf32> -> vector<4x262xf32>
    %154 = vector.extract_strided_slice %153 {offsets = [0, 0], sizes = [4, 256], strides = [1, 1]} : vector<4x262xf32> to vector<4x256xf32>
    %c-3_i32_55 = arith.constant -3 : i32
    %155 = vector.broadcast %c-3_i32_55 : i32 to vector<1x256xi32>
    %156 = arith.addi %18, %155 : vector<1x256xi32>
    %c0_i32_56 = arith.constant 0 : i32
    %157 = vector.broadcast %c0_i32_56 : i32 to vector<1x256xi32>
    %158 = arith.cmpi sge, %156, %157 : vector<1x256xi32>
    %c-3_i32_57 = arith.constant -3 : i32
    %159 = vector.broadcast %c-3_i32_57 : i32 to vector<1x256xi32>
    %160 = arith.addi %18, %159 : vector<1x256xi32>
    %c16_i32_58 = arith.constant 16 : i32
    %161 = vector.broadcast %c16_i32_58 : i32 to vector<1x256xi32>
    %162 = arith.cmpi slt, %160, %161 : vector<1x256xi32>
    %163 = arith.andi %158, %162 : vector<1x256xi1>
    %cst_59 = arith.constant 0.000000e+00 : f32
    %164 = vector.shape_cast %163 : vector<1x256xi1> to vector<1x256xi1>
    %165 = vector.broadcast %164 : vector<1x256xi1> to vector<4x256xi1>
    %166 = vector.broadcast %cst_59 : f32 to vector<4x256xf32>
    %167 = arith.select %165, %154, %166 : vector<4x256xi1>, vector<4x256xf32>
    %168 = vector.extract_strided_slice %153 {offsets = [0, 1], sizes = [4, 256], strides = [1, 1]} : vector<4x262xf32> to vector<4x256xf32>
    %c-2_i32_60 = arith.constant -2 : i32
    %169 = vector.broadcast %c-2_i32_60 : i32 to vector<1x256xi32>
    %170 = arith.addi %18, %169 : vector<1x256xi32>
    %c0_i32_61 = arith.constant 0 : i32
    %171 = vector.broadcast %c0_i32_61 : i32 to vector<1x256xi32>
    %172 = arith.cmpi sge, %170, %171 : vector<1x256xi32>
    %c-2_i32_62 = arith.constant -2 : i32
    %173 = vector.broadcast %c-2_i32_62 : i32 to vector<1x256xi32>
    %174 = arith.addi %18, %173 : vector<1x256xi32>
    %c16_i32_63 = arith.constant 16 : i32
    %175 = vector.broadcast %c16_i32_63 : i32 to vector<1x256xi32>
    %176 = arith.cmpi slt, %174, %175 : vector<1x256xi32>
    %177 = arith.andi %172, %176 : vector<1x256xi1>
    %cst_64 = arith.constant 0.000000e+00 : f32
    %178 = vector.shape_cast %177 : vector<1x256xi1> to vector<1x256xi1>
    %179 = vector.broadcast %178 : vector<1x256xi1> to vector<4x256xi1>
    %180 = vector.broadcast %cst_64 : f32 to vector<4x256xf32>
    %181 = arith.select %179, %168, %180 : vector<4x256xi1>, vector<4x256xf32>
    %182 = vector.extract_strided_slice %153 {offsets = [0, 2], sizes = [4, 256], strides = [1, 1]} : vector<4x262xf32> to vector<4x256xf32>
    %c-1_i32_65 = arith.constant -1 : i32
    %183 = vector.broadcast %c-1_i32_65 : i32 to vector<1x256xi32>
    %184 = arith.addi %18, %183 : vector<1x256xi32>
    %c0_i32_66 = arith.constant 0 : i32
    %185 = vector.broadcast %c0_i32_66 : i32 to vector<1x256xi32>
    %186 = arith.cmpi sge, %184, %185 : vector<1x256xi32>
    %c-1_i32_67 = arith.constant -1 : i32
    %187 = vector.broadcast %c-1_i32_67 : i32 to vector<1x256xi32>
    %188 = arith.addi %18, %187 : vector<1x256xi32>
    %c16_i32_68 = arith.constant 16 : i32
    %189 = vector.broadcast %c16_i32_68 : i32 to vector<1x256xi32>
    %190 = arith.cmpi slt, %188, %189 : vector<1x256xi32>
    %191 = arith.andi %186, %190 : vector<1x256xi1>
    %cst_69 = arith.constant 0.000000e+00 : f32
    %192 = vector.shape_cast %191 : vector<1x256xi1> to vector<1x256xi1>
    %193 = vector.broadcast %192 : vector<1x256xi1> to vector<4x256xi1>
    %194 = vector.broadcast %cst_69 : f32 to vector<4x256xf32>
    %195 = arith.select %193, %182, %194 : vector<4x256xi1>, vector<4x256xf32>
    %196 = vector.extract_strided_slice %153 {offsets = [0, 3], sizes = [4, 256], strides = [1, 1]} : vector<4x262xf32> to vector<4x256xf32>
    %c0_i32_70 = arith.constant 0 : i32
    %197 = vector.broadcast %c0_i32_70 : i32 to vector<1x256xi32>
    %198 = arith.addi %18, %197 : vector<1x256xi32>
    %c0_i32_71 = arith.constant 0 : i32
    %199 = vector.broadcast %c0_i32_71 : i32 to vector<1x256xi32>
    %200 = arith.cmpi sge, %198, %199 : vector<1x256xi32>
    %c0_i32_72 = arith.constant 0 : i32
    %201 = vector.broadcast %c0_i32_72 : i32 to vector<1x256xi32>
    %202 = arith.addi %18, %201 : vector<1x256xi32>
    %c16_i32_73 = arith.constant 16 : i32
    %203 = vector.broadcast %c16_i32_73 : i32 to vector<1x256xi32>
    %204 = arith.cmpi slt, %202, %203 : vector<1x256xi32>
    %205 = arith.andi %200, %204 : vector<1x256xi1>
    %cst_74 = arith.constant 0.000000e+00 : f32
    %206 = vector.shape_cast %205 : vector<1x256xi1> to vector<1x256xi1>
    %207 = vector.broadcast %206 : vector<1x256xi1> to vector<4x256xi1>
    %208 = vector.broadcast %cst_74 : f32 to vector<4x256xf32>
    %209 = arith.select %207, %196, %208 : vector<4x256xi1>, vector<4x256xf32>
    %210 = vector.extract_strided_slice %153 {offsets = [0, 4], sizes = [4, 256], strides = [1, 1]} : vector<4x262xf32> to vector<4x256xf32>
    %c1_i32_75 = arith.constant 1 : i32
    %211 = vector.broadcast %c1_i32_75 : i32 to vector<1x256xi32>
    %212 = arith.addi %18, %211 : vector<1x256xi32>
    %c0_i32_76 = arith.constant 0 : i32
    %213 = vector.broadcast %c0_i32_76 : i32 to vector<1x256xi32>
    %214 = arith.cmpi sge, %212, %213 : vector<1x256xi32>
    %c1_i32_77 = arith.constant 1 : i32
    %215 = vector.broadcast %c1_i32_77 : i32 to vector<1x256xi32>
    %216 = arith.addi %18, %215 : vector<1x256xi32>
    %c16_i32_78 = arith.constant 16 : i32
    %217 = vector.broadcast %c16_i32_78 : i32 to vector<1x256xi32>
    %218 = arith.cmpi slt, %216, %217 : vector<1x256xi32>
    %219 = arith.andi %214, %218 : vector<1x256xi1>
    %cst_79 = arith.constant 0.000000e+00 : f32
    %220 = vector.shape_cast %219 : vector<1x256xi1> to vector<1x256xi1>
    %221 = vector.broadcast %220 : vector<1x256xi1> to vector<4x256xi1>
    %222 = vector.broadcast %cst_79 : f32 to vector<4x256xf32>
    %223 = arith.select %221, %210, %222 : vector<4x256xi1>, vector<4x256xf32>
    %224 = vector.extract_strided_slice %153 {offsets = [0, 5], sizes = [4, 256], strides = [1, 1]} : vector<4x262xf32> to vector<4x256xf32>
    %c2_i32_80 = arith.constant 2 : i32
    %225 = vector.broadcast %c2_i32_80 : i32 to vector<1x256xi32>
    %226 = arith.addi %18, %225 : vector<1x256xi32>
    %c0_i32_81 = arith.constant 0 : i32
    %227 = vector.broadcast %c0_i32_81 : i32 to vector<1x256xi32>
    %228 = arith.cmpi sge, %226, %227 : vector<1x256xi32>
    %c2_i32_82 = arith.constant 2 : i32
    %229 = vector.broadcast %c2_i32_82 : i32 to vector<1x256xi32>
    %230 = arith.addi %18, %229 : vector<1x256xi32>
    %c16_i32_83 = arith.constant 16 : i32
    %231 = vector.broadcast %c16_i32_83 : i32 to vector<1x256xi32>
    %232 = arith.cmpi slt, %230, %231 : vector<1x256xi32>
    %233 = arith.andi %228, %232 : vector<1x256xi1>
    %cst_84 = arith.constant 0.000000e+00 : f32
    %234 = vector.shape_cast %233 : vector<1x256xi1> to vector<1x256xi1>
    %235 = vector.broadcast %234 : vector<1x256xi1> to vector<4x256xi1>
    %236 = vector.broadcast %cst_84 : f32 to vector<4x256xf32>
    %237 = arith.select %235, %224, %236 : vector<4x256xi1>, vector<4x256xf32>
    %238 = vector.extract_strided_slice %153 {offsets = [0, 6], sizes = [4, 256], strides = [1, 1]} : vector<4x262xf32> to vector<4x256xf32>
    %c3_i32_85 = arith.constant 3 : i32
    %239 = vector.broadcast %c3_i32_85 : i32 to vector<1x256xi32>
    %240 = arith.addi %18, %239 : vector<1x256xi32>
    %c0_i32_86 = arith.constant 0 : i32
    %241 = vector.broadcast %c0_i32_86 : i32 to vector<1x256xi32>
    %242 = arith.cmpi sge, %240, %241 : vector<1x256xi32>
    %c3_i32_87 = arith.constant 3 : i32
    %243 = vector.broadcast %c3_i32_87 : i32 to vector<1x256xi32>
    %244 = arith.addi %18, %243 : vector<1x256xi32>
    %c16_i32_88 = arith.constant 16 : i32
    %245 = vector.broadcast %c16_i32_88 : i32 to vector<1x256xi32>
    %246 = arith.cmpi slt, %244, %245 : vector<1x256xi32>
    %247 = arith.andi %242, %246 : vector<1x256xi1>
    %cst_89 = arith.constant 0.000000e+00 : f32
    %248 = vector.shape_cast %247 : vector<1x256xi1> to vector<1x256xi1>
    %249 = vector.broadcast %248 : vector<1x256xi1> to vector<4x256xi1>
    %250 = vector.broadcast %cst_89 : f32 to vector<4x256xf32>
    %251 = arith.select %249, %238, %250 : vector<4x256xi1>, vector<4x256xf32>
    %252 = tpu.concatenate %167, %181, %195, %209, %223, %237, %251 in 0 : vector<4x256xf32>, vector<4x256xf32>, vector<4x256xf32>, vector<4x256xf32>, vector<4x256xf32>, vector<4x256xf32>, vector<4x256xf32> -> vector<28x256xf32>
    %cst_90 = arith.constant dense<0.000000e+00> : vector<4x256xf32>
    %253 = tpu.matmul %151, %252, %cst_90 {dimension_numbers = #tpu.dot_dimension_numbers<[1], [0], [0], [1], [0, 0, 1, 1], [], []>} : vector<4x28xf32>, vector<28x256xf32>, vector<4x256xf32> -> vector<4x256xf32>
    %254 = arith.addf %150, %253 : vector<4x256xf32>
    %c0_91 = arith.constant 0 : index
    %c0_92 = arith.constant 0 : index
    %c0_93 = arith.constant 0 : index
    %255 = vector.load %arg6[%c0_91, %c0_92, %c0_93] : memref<1x4x256xf32, #tpu.memory_space<vmem>>, vector<1x4x256xf32>
    %256 = vector.shape_cast %255 : vector<1x4x256xf32> to vector<4x256xf32>
    %257 = vector.shape_cast %254 : vector<4x256xf32> to vector<1x4x256xf32>
    tpu.vector_store %arg6[%c0_91, %c0_92, %c0_93], %257 {strides = array<i32>} : memref<1x4x256xf32, #tpu.memory_space<vmem>>, vector<1x4x256xf32>,
    return
  }
  func.func @transform_0(%arg0: i32) -> (i32, i32, i32) {
    %c0_i32 = arith.constant 0 : i32
    %c0_i32_0 = arith.constant 0 : i32
    %c0_i32_1 = arith.constant 0 : i32
    return %arg0, %c0_i32, %c0_i32_0 : i32, i32, i32
  }
  func.func @transform_1(%arg0: i32) -> (i32, i32) {
    %c0_i32 = arith.constant 0 : i32
    %c0_i32_0 = arith.constant 0 : i32
    %c0_i32_1 = arith.constant 0 : i32
    return %c0_i32, %c0_i32_0 : i32, i32
  }
  func.func @transform_2(%arg0: i32) -> (i32, i32) {
    %c0_i32 = arith.constant 0 : i32
    %c0_i32_0 = arith.constant 0 : i32
    %c0_i32_1 = arith.constant 0 : i32
    return %c0_i32, %c0_i32_0 : i32, i32
  }
  func.func @transform_3(%arg0: i32) -> (i32, i32) {
    %c0_i32 = arith.constant 0 : i32
    %c0_i32_0 = arith.constant 0 : i32
    %c0_i32_1 = arith.constant 0 : i32
    return %c0_i32, %c0_i32_0 : i32, i32
  }
  func.func @transform_4(%arg0: i32) -> (i32, i32) {
    %c0_i32 = arith.constant 0 : i32
    %c0_i32_0 = arith.constant 0 : i32
    %c0_i32_1 = arith.constant 0 : i32
    return %c0_i32, %c0_i32_0 : i32, i32
  }
  func.func @transform_5(%arg0: i32) -> (i32, i32, i32) {
    %c0_i32 = arith.constant 0 : i32
    %c0_i32_0 = arith.constant 0 : i32
    %c0_i32_1 = arith.constant 0 : i32
    return %arg0, %c0_i32, %c0_i32_0 : i32, i32, i32
  }
}

</mosaic_0001>

<llo_original>
// kernel: tpu_custom_call.1
$region0: #{tpu_custom_call.1}
  #allocation0 [shape = 'u32[]', space=smem, size = 0x4, offset = 0x4, fixed_abs, tag = 'smem constant byte address 0x4 - core index']
  #allocation1 [shape = 'u32[144,128]{1,0:T(1,128)}', space=vmem, size = 0x12000, scoped, tag = 'internal scratch']
  %s0 = inlined_call_operand.hbm [shape: f32[2,8,256], index: 0, kind: input, shape index: {}]
  %s1 = inlined_call_operand.hbm [shape: f32[4,56], index: 1, kind: input, shape index: {}]
  %s2 = inlined_call_operand.vmem [shape: f32[4,28], index: 2, kind: input, shape index: {}]
  %s3 = inlined_call_operand.vmem [shape: f32[4,56], index: 3, kind: input, shape index: {}]
  %s4 = inlined_call_operand.vmem [shape: f32[4,28], index: 4, kind: input, shape index: {}]
  %s5 = inlined_call_operand.hbm [shape: f32[2,4,256], index: 5, kind: output, shape index: {}]
  %s6 = sld [smem:[#allocation0]]
  $region61: #{tpu_custom_call.1} parent=0
    _
  %s8 = ssub.s32 1, %s6
  %s9 = scalar_select 0, %s8, %s6
  $region1: #{tpu_custom_call.1} parent=0
    #allocation2 [shape = 'u8[16384]{0}', space=vmem, size = 0x4000, scoped, tag = 'input window, operand 0']
    #allocation3 [shape = 's32[2]{0}', space=sflag, size = 0x8, scoped, tag = 'scoped memory for tpu_custom_call.1']
    #allocation4 [shape = 's32[2]{0}', space=sflag, size = 0x8, scoped, tag = 'scoped memory for tpu_custom_call.1']
    #allocation5 [shape = 'u8[2048]{0}', space=vmem, size = 0x800, scoped, tag = 'input window, operand 1, single buffered']
    #allocation6 [shape = 's32[1]{0}', space=sflag, size = 0x4, scoped, tag = 'scoped memory for tpu_custom_call.1']
    #allocation7 [shape = 'u8[8192]{0}', space=vmem, size = 0x2000, scoped, tag = 'output window, operand 0']
    %10 = vsyncpa [#allocation3], 0
    %s11 = scalar_lea.sflag [#allocation3], 1
    %12 = vsyncpa %s11, 0
    %13 = vsyncpa [#allocation6], 0
    %14 = vsyncpa [#allocation4], 0
    %s15 = scalar_lea.sflag [#allocation4], 1
    %16 = vsyncpa %s15, 0
    loop: start=0, step=1, limit=4
    $region2: #{tpu_custom_call.1} parent=1 // loop_pre_header
      _
    $region3: #{tpu_custom_call.1} parent=1 // loop_header
      %s18 = sphi 0, %s22
      %p19 = scmp.ge.s32.totalorder %s18, 4
      %s28 = sphi 0, %s30
      %s31 = sphi 0, %s28
      %s32 = sphi 0, %s31
      %s48 = sphi 0, %s32
      %s52 = sphi 0, %s52
      %s54 = sphi 0, %s52
      %s55 = sphi 0, %s54
      %s69 = sphi 0, %s55
      %s73 = sphi 0, %s73
      %s75 = sphi 0, %s73
      %s76 = sphi 0, %s75
      %s90 = sphi 0, %s76
      %s94 = sphi 0, %s94
      %s96 = sphi 0, %s94
      %s97 = sphi 0, %s96
      %s111 = sphi 0, %s97
      %s115 = sphi 0, %s115
      %s117 = sphi 0, %s115
      %s118 = sphi 0, %s117
      %s132 = sphi 0, %s118
      %s138 = sphi 0, %s140
      %s141 = sphi 0, %s138
      %s142 = sphi 0, %s141
      %s158 = sphi 0, %s142
    $region4: #{tpu_custom_call.1} parent=1 // loop_header_branch
      %21 = sbr.rel (%p19) target = $region8
    $region5: #{tpu_custom_call.1} parent=1 // loop_body
      %s23 = ssub.s32 %s18, 1
      %s24 = ssub.s32 %s18, 2
      %s25 = sadd.s32 %s18, 1
      %s26 = ssub.s32 %s18, %s25
      %p27 = scmp.eq.s32.totalorder %s26, 0
      %s29 = sadd.s32 %s28, 1
      %s30 = scalar_select %p27, %s28, %s29
      %p33 = pneg %p27
      %p34 = scmp.eq.s32.totalorder %s18, 1
      %p35 = por %p33, %p34
      %p36 = scmp.ne.s32.totalorder %s28, %s31
      %p37 = scmp.eq.s32.totalorder %s18, 0
      %p38 = por %p36, %p37
      %p39 = scmp.ne.s32.totalorder %s28, %s31
      %p40 = scmp.eq.s32.totalorder %s23, 1
      %p41 = por %p39, %p40
      %p42 = scmp.ne.s32.totalorder %s31, %s32
      %p43 = scmp.eq.s32.totalorder %s23, 0
      %p44 = por %p42, %p43
      %p45 = scmp.ne.s32.totalorder %s31, %s32
      %p46 = scmp.eq.s32.totalorder %s24, 1
      %p47 = por %p45, %p46
      %p49 = scmp.ne.s32.totalorder %s32, %s48
      %p50 = scmp.eq.s32.totalorder %s24, 0
      %p51 = por %p49, %p50
      %s53 = sadd.s32 %s52, 1
      %p56 = scmp.eq.s32.totalorder %s18, 1
      %p57 = scmp.ne.s32.totalorder %s52, %s54
      %p58 = scmp.eq.s32.totalorder %s18, 0
      %p59 = por %p57, %p58
      %p60 = scmp.ne.s32.totalorder %s52, %s54
      %p61 = scmp.eq.s32.totalorder %s23, 1
      %p62 = por %p60, %p61
      %p63 = scmp.ne.s32.totalorder %s54, %s55
      %p64 = scmp.eq.s32.totalorder %s23, 0
      %p65 = por %p63, %p64
      %p66 = scmp.ne.s32.totalorder %s54, %s55
      %p67 = scmp.eq.s32.totalorder %s24, 1
      %p68 = por %p66, %p67
      %p70 = scmp.ne.s32.totalorder %s55, %s69
      %p71 = scmp.eq.s32.totalorder %s24, 0
      %p72 = por %p70, %p71
      %s74 = sadd.s32 %s73, 1
      %p77 = scmp.eq.s32.totalorder %s18, 1
      %p78 = scmp.ne.s32.totalorder %s73, %s75
      %p79 = scmp.eq.s32.totalorder %s18, 0
      %p80 = por %p78, %p79
      %p81 = scmp.ne.s32.totalorder %s73, %s75
      %p82 = scmp.eq.s32.totalorder %s23, 1
      %p83 = por %p81, %p82
      %p84 = scmp.ne.s32.totalorder %s75, %s76
      %p85 = scmp.eq.s32.totalorder %s23, 0
      %p86 = por %p84, %p85
      %p87 = scmp.ne.s32.totalorder %s75, %s76
      %p88 = scmp.eq.s32.totalorder %s24, 1
      %p89 = por %p87, %p88
      %p91 = scmp.ne.s32.totalorder %s76, %s90
      %p92 = scmp.eq.s32.totalorder %s24, 0
      %p93 = por %p91, %p92
      %s95 = sadd.s32 %s94, 1
      %p98 = scmp.eq.s32.totalorder %s18, 1
      %p99 = scmp.ne.s32.totalorder %s94, %s96
      %p100 = scmp.eq.s32.totalorder %s18, 0
      %p101 = por %p99, %p100
      %p102 = scmp.ne.s32.totalorder %s94, %s96
      %p103 = scmp.eq.s32.totalorder %s23, 1
      %p104 = por %p102, %p103
      %p105 = scmp.ne.s32.totalorder %s96, %s97
      %p106 = scmp.eq.s32.totalorder %s23, 0
      %p107 = por %p105, %p106
      %p108 = scmp.ne.s32.totalorder %s96, %s97
      %p109 = scmp.eq.s32.totalorder %s24, 1
      %p110 = por %p108, %p109
      %p112 = scmp.ne.s32.totalorder %s97, %s111
      %p113 = scmp.eq.s32.totalorder %s24, 0
      %p114 = por %p112, %p113
      %s116 = sadd.s32 %s115, 1
      %p119 = scmp.eq.s32.totalorder %s18, 1
      %p120 = scmp.ne.s32.totalorder %s115, %s117
      %p121 = scmp.eq.s32.totalorder %s18, 0
      %p122 = por %p120, %p121
      %p123 = scmp.ne.s32.totalorder %s115, %s117
      %p124 = scmp.eq.s32.totalorder %s23, 1
      %p125 = por %p123, %p124
      %p126 = scmp.ne.s32.totalorder %s117, %s118
      %p127 = scmp.eq.s32.totalorder %s23, 0
      %p128 = por %p126, %p127
      %p129 = scmp.ne.s32.totalorder %s117, %s118
      %p130 = scmp.eq.s32.totalorder %s24, 1
      %p131 = por %p129, %p130
      %p133 = scmp.ne.s32.totalorder %s118, %s132
      %p134 = scmp.eq.s32.totalorder %s24, 0
      %p135 = por %p133, %p134
      %s136 = ssub.s32 %s18, %s25
      %p137 = scmp.eq.s32.totalorder %s136, 0
      %s139 = sadd.s32 %s138, 1
      %s140 = scalar_select %p137, %s138, %s139
      %p143 = pneg %p137
      %p144 = scmp.eq.s32.totalorder %s18, 1
      %p145 = por %p143, %p144
      %p146 = scmp.ne.s32.totalorder %s138, %s141
      %p147 = scmp.eq.s32.totalorder %s18, 0
      %p148 = por %p146, %p147
      %p149 = scmp.ne.s32.totalorder %s138, %s141
      %p150 = scmp.eq.s32.totalorder %s23, 1
      %p151 = por %p149, %p150
      %p152 = scmp.ne.s32.totalorder %s141, %s142
      %p153 = scmp.eq.s32.totalorder %s23, 0
      %p154 = por %p152, %p153
      %p155 = scmp.ne.s32.totalorder %s141, %s142
      %p156 = scmp.eq.s32.totalorder %s24, 1
      %p157 = por %p155, %p156
      %p159 = scmp.ne.s32.totalorder %s142, %s158
      %p160 = scmp.eq.s32.totalorder %s24, 0
      %p161 = por %p159, %p160
      %p162 = scmp.le.s32.totalorder 1, %s18
      %p163 = scmp.lt.s32.totalorder %s18, 3
      %p164 = pnand %p162, %p163
      %p165 = pneg %p164
      // Predicated region
      $region9: #{tpu_custom_call.1} parent=5 // pred_check
        _
      $region10: #{tpu_custom_call.1} parent=5 // pred_check_branch
        %167 = sbr.rel (%p164) target = $region12
      $region11: #{tpu_custom_call.1} parent=5 // pred_region
        %s168 = ssub.s32 %s18, 1
        // Predicated region
        $region13: #{tpu_custom_call.1} parent=11 // pred_check
          %p169 = pneg %p65
        $region14: #{tpu_custom_call.1} parent=11 // pred_check_branch
          %171 = sbr.rel (%p169) target = $region16
        $region15: #{tpu_custom_call.1} parent=11 // pred_region
          %s173 = ssub.s32 64, 64
          %174 = vsyncadd [#allocation6], %s173
          %s176 = sshll.u32 [#allocation5], 4
          %s177 = int_to_ptr.vmem [resolvable:$true] %s176
          %179 = dma.hbm_to_vmem [thread:$0]  %s1, 64, %s177, [#allocation6]
        $region16: #{tpu_custom_call.1} parent=11 // pred_fallthru
          _
        // Predicated region
        $region17: #{tpu_custom_call.1} parent=11 // pred_check
          %p180 = pneg %p86
        $region18: #{tpu_custom_call.1} parent=11 // pred_check_branch
          %182 = sbr.rel (%p180) target = $region20
        $region19: #{tpu_custom_call.1} parent=11 // pred_region
          _
        $region20: #{tpu_custom_call.1} parent=11 // pred_fallthru
          _
        // Predicated region
        $region21: #{tpu_custom_call.1} parent=11 // pred_check
          %p183 = pneg %p107
        $region22: #{tpu_custom_call.1} parent=11 // pred_check_branch
          %185 = sbr.rel (%p183) target = $region24
        $region23: #{tpu_custom_call.1} parent=11 // pred_region
          _
        $region24: #{tpu_custom_call.1} parent=11 // pred_fallthru
          _
        // Predicated region
        $region25: #{tpu_custom_call.1} parent=11 // pred_check
          %p186 = pneg %p128
        $region26: #{tpu_custom_call.1} parent=11 // pred_check_branch
          %188 = sbr.rel (%p186) target = $region28
        $region27: #{tpu_custom_call.1} parent=11 // pred_region
          _
        $region28: #{tpu_custom_call.1} parent=11 // pred_fallthru
          _
      $region12: #{tpu_custom_call.1} parent=5 // pred_fallthru
        _
      %p189 = scmp.lt.s32.totalorder %s18, 2
      // Predicated region
      $region29: #{tpu_custom_call.1} parent=5 // pred_check
        %p190 = pneg %p189
      $region30: #{tpu_custom_call.1} parent=5 // pred_check_branch
        %192 = sbr.rel (%p190) target = $region32
      $region31: #{tpu_custom_call.1} parent=5 // pred_region
        // Predicated region
        $region33: #{tpu_custom_call.1} parent=31 // pred_check
          %p193 = pneg %p38
        $region34: #{tpu_custom_call.1} parent=31 // pred_check_branch
          %195 = sbr.rel (%p193) target = $region36
        $region35: #{tpu_custom_call.1} parent=31 // pred_region
          %s196 = sand.u32 %s28, 1
          %s197 = scalar_lea.sflag [#allocation3], %s196
          %s198 = sand.u32 %s28, 1
          %s199 = smul.addr %s198, 16
          %s200 = scalar_lea.vmem [#allocation2], %s199
          %s202 = ssub.s32 256, 256
          %203 = vsyncadd %s197, %s202
          %s204 = smul.addr %s18, 2
          %s205 = smul.addr %s204, 128
          %s206 = scalar_lea.hbm %s0, %s205
          %s208 = sshll.u32 %s200, 4
          %s209 = int_to_ptr.vmem [resolvable:$true] %s208
          %211 = dma.hbm_to_vmem [thread:$0]  %s206, 256, %s209, %s197
        $region36: #{tpu_custom_call.1} parent=31 // pred_fallthru
          _
      $region32: #{tpu_custom_call.1} parent=5 // pred_fallthru
        _
      %p212 = scmp.le.s32.totalorder 1, %s18
      %p213 = scmp.lt.s32.totalorder %s18, 3
      %p214 = pnand %p212, %p213
      %p215 = pneg %p214
      // Predicated region
      $region37: #{tpu_custom_call.1} parent=5 // pred_check
        _
      $region38: #{tpu_custom_call.1} parent=5 // pred_check_branch
        %217 = sbr.rel (%p214) target = $region40
      $region39: #{tpu_custom_call.1} parent=5 // pred_region
        %s218 = ssub.s32 %s18, 1
        %s219 = sand.u32 %s31, 1
        %s220 = scalar_lea.sflag [#allocation3], %s219
        %s221 = sand.u32 %s31, 1
        %s222 = smul.addr %s221, 16
        %s223 = scalar_lea.vmem [#allocation2], %s222
        // Predicated region
        $region41: #{tpu_custom_call.1} parent=39 // pred_check
          %p224 = pneg %p44
        $region42: #{tpu_custom_call.1} parent=39 // pred_check_branch
          %226 = sbr.rel (%p224) target = $region44
        $region43: #{tpu_custom_call.1} parent=39 // pred_region
          %227 = dma.done %s220, 256
        $region44: #{tpu_custom_call.1} parent=39 // pred_fallthru
          _
        // Predicated region
        $region45: #{tpu_custom_call.1} parent=39 // pred_check
          %p228 = pneg %p65
        $region46: #{tpu_custom_call.1} parent=39 // pred_check_branch
          %230 = sbr.rel (%p228) target = $region48
        $region47: #{tpu_custom_call.1} parent=39 // pred_region
          %231 = dma.done [#allocation6], 64
        $region48: #{tpu_custom_call.1} parent=39 // pred_fallthru
          _
        %s232 = sand.u32 %s31, 1
        %s233 = scalar_lea.sflag [#allocation3], %s232
        %s234 = sand.u32 %s31, 1
        %s235 = smul.addr %s234, 16
        %s236 = scalar_lea.vmem [#allocation2], %s235
        %p237 = pneg %p44
        %p238 = pneg %p41
        %p239 = pneg %p65
        %p240 = pneg %p62
        %p241 = pneg %p86
        %p242 = pneg %p83
        %p243 = pneg %p107
        %p244 = pneg %p104
        %p245 = pneg %p128
        %p246 = pneg %p125
        %p247 = pneg %p154
        %p248 = pneg %p151
        %s249 = sand.u32 %s141, 1
        %s250 = scalar_lea.sflag [#allocation4], %s249
        %s251 = sand.u32 %s141, 1
        %s252 = smul.addr %s251, 8
        %s253 = scalar_lea.vmem [#allocation7], %s252
        %v254 = vld [vmem:[%s223] sm:$0xff]
        %v255 = vld [vmem:[%s223 + $0x8] sm:$0xff]
        %v256 = vlaneseq
        %v257 = vand.u32 %v256, 127
        %v258 = vadd.s32 %v257, 128
        %vm259 = vcmp.lt.s32.totalorder %v257, 0
        %v260 = vsub.s32 0, %v257
        %v261 = vsel %vm259, %v260, %v257
        %v262 = vshrl.u32 %v261, 4
        %v263 = vand.u32 %v261, 15
        %v264 = vsub.s32 0, %v263
        %v265 = vsel %vm259, %v264, %v263
        %vm266 = vcmp.lt.s32.totalorder %v258, 0
        %v267 = vsub.s32 0, %v258
        %v268 = vsel %vm266, %v267, %v258
        %v269 = vshrl.u32 %v268, 4
        %v270 = vand.u32 %v268, 15
        %v271 = vsub.s32 0, %v270
        %v272 = vsel %vm266, %v271, %v270
        %vm273 = vcmp.ne.s32.totalorder %v265, 0
        %vm274 = vcmp.ne.s32.totalorder %v272, 0
        %vm275 = vcmp.lt.s32.totalorder %v265, 0
        %vm276 = vcmp.lt.s32.totalorder %v272, 0
        %vm277 = vmand %vm275, %vm273
        %vm278 = vmand %vm276, %vm274
        %v279 = vadd.s32 %v265, 16
        %v280 = vadd.s32 %v272, 16
        %v281 = vsel %vm277, %v279, %v265
        %v282 = vsel %vm278, %v280, %v272
        %v283 = vld [vmem:[#allocation5] sm:$0xf]
        %286 = vrot.lane.b32.xlu0 %v254, 3
        %v287 = vpop.permute.xlu0 %286
        %288 = vrot.lane.b32.xlu0 %v255, 3
        %v289 = vpop.permute.xlu0 %288
        %vm290 = vcmask 23552
        %v291 = vsel %vm290, %v287, %v289
        %v295 = vsel %vm290, 0.0, %v287
        %v296 = vsel %vm290, %v289, 0.0
        %v297 = vadd.s32 %v281, 4294967293
        %v298 = vadd.s32 %v282, 4294967293
        %vm299 = vcmp.ge.s32.totalorder %v297, 0
        %vm300 = vcmp.ge.s32.totalorder %v298, 0
        %vm301 = vcmp.lt.s32.totalorder %v297, 16
        %vm302 = vcmp.lt.s32.totalorder %v298, 16
        %vm303 = vmand %vm299, %vm301
        %vm304 = vmand %vm300, %vm302
        %v305 = vsel %vm303, 1, 0
        %v306 = vsel %vm304, 1, 0
        %vm307 = vcmp.eq.s32.totalorder %v305, 1
        %vm308 = vcmp.eq.s32.totalorder %v306, 1
        %v309 = vsel %vm307, %v295, 0.0
        %v310 = vsel %vm308, %v291, 0.0
        %v311 = vadd.s32 %v281, 4294967294
        %v312 = vadd.s32 %v282, 4294967294
        %vm313 = vcmp.ge.s32.totalorder %v311, 0
        %vm314 = vcmp.ge.s32.totalorder %v312, 0
        %vm315 = vcmp.lt.s32.totalorder %v311, 16
        %vm316 = vcmp.lt.s32.totalorder %v312, 16
        %vm317 = vmand %vm313, %vm315
        %vm318 = vmand %vm314, %vm316
        %v319 = vsel %vm317, 1, 0
        %v320 = vsel %vm318, 1, 0
        %vm321 = vcmp.eq.s32.totalorder %v319, 1
        %vm322 = vcmp.eq.s32.totalorder %v320, 1
        %325 = vrot.lane.b32.xlu0 %v295, 127
        %v326 = vpop.permute.xlu0 %325
        %327 = vrot.lane.b32.xlu0 %v291, 127
        %v328 = vpop.permute.xlu0 %327
        %329 = vrot.lane.b32.xlu0 %v296, 127
        %v330 = vpop.permute.xlu0 %329
        %vm331 = vcmask 1039360
        %v332 = vsel %vm331, %v326, %v328
        %v333 = vsel %vm331, %v328, %v330
        %v336 = vsel %vm321, %v332, 0.0
        %v337 = vsel %vm322, %v333, 0.0
        %v338 = vadd.s32 %v281, 4294967295
        %v339 = vadd.s32 %v282, 4294967295
        %vm340 = vcmp.ge.s32.totalorder %v338, 0
        %vm341 = vcmp.ge.s32.totalorder %v339, 0
        %vm342 = vcmp.lt.s32.totalorder %v338, 16
        %vm343 = vcmp.lt.s32.totalorder %v339, 16
        %vm344 = vmand %vm340, %vm342
        %vm345 = vmand %vm341, %vm343
        %v346 = vsel %vm344, 1, 0
        %v347 = vsel %vm345, 1, 0
        %vm348 = vcmp.eq.s32.totalorder %v346, 1
        %vm349 = vcmp.eq.s32.totalorder %v347, 1
        %350 = vrot.lane.b32.xlu0 %v295, 126
        %v351 = vpop.permute.xlu0 %350
        %352 = vrot.lane.b32.xlu0 %v291, 126
        %v353 = vpop.permute.xlu0 %352
        %354 = vrot.lane.b32.xlu0 %v296, 126
        %v355 = vpop.permute.xlu0 %354
        %vm356 = vcmask 1031168
        %v357 = vsel %vm356, %v351, %v353
        %v358 = vsel %vm356, %v353, %v355
        %v361 = vsel %vm348, %v357, 0.0
        %v362 = vsel %vm349, %v358, 0.0
        %vm363 = vcmp.ge.s32.totalorder %v281, 0
        %vm364 = vcmp.ge.s32.totalorder %v282, 0
        %vm365 = vcmp.lt.s32.totalorder %v281, 16
        %vm366 = vcmp.lt.s32.totalorder %v282, 16
        %vm367 = vmand %vm363, %vm365
        %vm368 = vmand %vm364, %vm366
        %v369 = vsel %vm367, 1, 0
        %v370 = vsel %vm368, 1, 0
        %vm371 = vcmp.eq.s32.totalorder %v369, 1
        %vm372 = vcmp.eq.s32.totalorder %v370, 1
        %373 = vrot.lane.b32.xlu0 %v295, 125
        %v374 = vpop.permute.xlu0 %373
        %375 = vrot.lane.b32.xlu0 %v291, 125
        %v376 = vpop.permute.xlu0 %375
        %377 = vrot.lane.b32.xlu0 %v296, 125
        %v378 = vpop.permute.xlu0 %377
        %vm379 = vcmask 1022976
        %v380 = vsel %vm379, %v374, %v376
        %v381 = vsel %vm379, %v376, %v378
        %v384 = vsel %vm371, %v380, 0.0
        %v385 = vsel %vm372, %v381, 0.0
        %v386 = vadd.s32 %v281, 1
        %v387 = vadd.s32 %v282, 1
        %vm388 = vcmp.ge.s32.totalorder %v386, 0
        %vm389 = vcmp.ge.s32.totalorder %v387, 0
        %vm390 = vcmp.lt.s32.totalorder %v386, 16
        %vm391 = vcmp.lt.s32.totalorder %v387, 16
        %vm392 = vmand %vm388, %vm390
        %vm393 = vmand %vm389, %vm391
        %v394 = vsel %vm392, 1, 0
        %v395 = vsel %vm393, 1, 0
        %vm396 = vcmp.eq.s32.totalorder %v394, 1
        %vm397 = vcmp.eq.s32.totalorder %v395, 1
        %398 = vrot.lane.b32.xlu0 %v295, 124
        %v399 = vpop.permute.xlu0 %398
        %400 = vrot.lane.b32.xlu0 %v291, 124
        %v401 = vpop.permute.xlu0 %400
        %402 = vrot.lane.b32.xlu0 %v296, 124
        %v403 = vpop.permute.xlu0 %402
        %vm404 = vcmask 1014784
        %v405 = vsel %vm404, %v399, %v401
        %v406 = vsel %vm404, %v401, %v403
        %v409 = vsel %vm396, %v405, 0.0
        %v410 = vsel %vm397, %v406, 0.0
        %v411 = vadd.s32 %v281, 2
        %v412 = vadd.s32 %v282, 2
        %vm413 = vcmp.ge.s32.totalorder %v411, 0
        %vm414 = vcmp.ge.s32.totalorder %v412, 0
        %vm415 = vcmp.lt.s32.totalorder %v411, 16
        %vm416 = vcmp.lt.s32.totalorder %v412, 16
        %vm417 = vmand %vm413, %vm415
        %vm418 = vmand %vm414, %vm416
        %v419 = vsel %vm417, 1, 0
        %v420 = vsel %vm418, 1, 0
        %vm421 = vcmp.eq.s32.totalorder %v419, 1
        %vm422 = vcmp.eq.s32.totalorder %v420, 1
        %423 = vrot.lane.b32.xlu0 %v295, 123
        %v424 = vpop.permute.xlu0 %423
        %425 = vrot.lane.b32.xlu0 %v291, 123
        %v426 = vpop.permute.xlu0 %425
        %427 = vrot.lane.b32.xlu0 %v296, 123
        %v428 = vpop.permute.xlu0 %427
        %vm429 = vcmask 1006592
        %v430 = vsel %vm429, %v424, %v426
        %v431 = vsel %vm429, %v426, %v428
        %v434 = vsel %vm421, %v430, 0.0
        %v435 = vsel %vm422, %v431, 0.0
        %v436 = vadd.s32 %v281, 3
        %v437 = vadd.s32 %v282, 3
        %vm438 = vcmp.ge.s32.totalorder %v436, 0
        %vm439 = vcmp.ge.s32.totalorder %v437, 0
        %vm440 = vcmp.lt.s32.totalorder %v436, 16
        %vm441 = vcmp.lt.s32.totalorder %v437, 16
        %vm442 = vmand %vm438, %vm440
        %vm443 = vmand %vm439, %vm441
        %v444 = vsel %vm442, 1, 0
        %v445 = vsel %vm443, 1, 0
        %vm446 = vcmp.eq.s32.totalorder %v444, 1
        %vm447 = vcmp.eq.s32.totalorder %v445, 1
        %448 = vrot.lane.b32.xlu0 %v295, 122
        %v449 = vpop.permute.xlu0 %448
        %450 = vrot.lane.b32.xlu0 %v291, 122
        %v451 = vpop.permute.xlu0 %450
        %452 = vrot.lane.b32.xlu0 %v296, 122
        %v453 = vpop.permute.xlu0 %452
        %vm454 = vcmask 998400
        %v455 = vsel %vm454, %v449, %v451
        %v456 = vsel %vm454, %v451, %v453
        %v459 = vsel %vm446, %v455, 0.0
        %v460 = vsel %vm447, %v456, 0.0
        %vm461 = vcmask 457728
        %v463 = vsel %vm461, %v283, 0
        %465 = vmatprep.subr.mxu0 %v310
        %466 = vmatpush1.msra.mxu0 %v309
        %467 = vmatprep.subr.mxu0 %v337
        %468 = vmatpush1.msra.mxu0 %v336
        %469 = vmatprep.subr.mxu0 %v362
        %470 = vmatpush1.msra.mxu0 %v361
        %471 = vmatprep.subr.mxu0 %v385
        %472 = vmatpush1.msra.mxu0 %v384
        %473 = vmatprep.subr.mxu0 %v410
        %474 = vmatpush1.msra.mxu0 %v409
        %475 = vmatprep.subr.mxu0 %v435
        %476 = vmatpush1.msra.mxu0 %v434
        %477 = vmatprep.subr.mxu0 %v460
        %478 = vmatpush1.msra.mxu0 %v459
        %479 = vmatprep.subr.mxu0 0.0
        %480 = vmatpush1.msra.mxu0 0.0
        %481 = vmatprep.subr.mxu0 0.0
        %482 = vmatpush1.msra.mxu0 0.0
        %483 = vmatprep.subr.mxu0 0.0
        %484 = vmatpush1.msra.mxu0 0.0
        %485 = vmatprep.subr.mxu0 0.0
        %486 = vmatpush1.msra.mxu0 0.0
        %487 = vmatprep.subr.mxu0 0.0
        %488 = vmatpush1.msra.mxu0 0.0
        %489 = vmatprep.subr.mxu0 0.0
        %490 = vmatpush1.msra.mxu0 0.0
        %491 = vmatprep.subr.mxu0 0.0
        %492 = vmatpush1.msra.mxu0 0.0
        %493 = vmatprep.subr.mxu0 0.0
        %494 = vmatpush1.msra.mxu0 0.0
        %495 = vmatprep.subr.mxu0 0.0
        %496 = vmatpush1.msra.mxu0 0.0
        %497 = vmatprep.subr.mxu0 0.0
        %498 = vmatpush1.msra.mxu0 0.0
        %499 = vmatprep.subr.mxu0 0.0
        %500 = vmatpush1.msra.mxu0 0.0
        %501 = vmatprep.subr.mxu0 0.0
        %502 = vmatpush1.msra.mxu0 0.0
        %503 = vmatprep.subr.mxu0 0.0
        %504 = vmatpush1.msra.mxu0 0.0
        %505 = vmatprep.subr.mxu0 0.0
        %506 = vmatpush1.msra.mxu0 0.0
        %507 = vmatprep.subr.mxu0 0.0
        %508 = vmatpush1.msra.mxu0 0.0
        %509 = vmatprep.subr.mxu0 0.0
        %510 = vmatpush1.msra.mxu0 0.0
        %511 = vmatprep.subr.mxu0 0.0
        %512 = vmatpush1.msra.mxu0 0.0
        %513 = vmatprep.subr.mxu0 0.0
        %514 = vmatpush1.msra.mxu0 0.0
        %515 = vmatprep.subr.mxu0 0.0
        %516 = vmatpush1.msra.mxu0 0.0
        %517 = vmatprep.subr.mxu0 0.0
        %518 = vmatpush1.msra.mxu0 0.0
        %519 = vmatprep.subr.mxu0 0.0
        %520 = vmatpush1.msra.mxu0 0.0
        %521 = vmatprep.subr.mxu0 0.0
        %522 = vmatpush1.msra.mxu0 0.0
        %523 = vmatprep.subr.mxu0 0.0
        %524 = vmatpush1.msra.mxu0 0.0
        %525 = vmatprep.subr.mxu0 0.0
        %526 = vmatpush1.msra.mxu0 0.0
        %527 = vmatprep.subr.mxu0 0.0
        %528 = vmatpush1.msra.mxu0 0.0
        %529 = vmatprep.mubr.f32.mxu0 0.0
        %530 = vmatmul.mubr.f32.gmra.mrb[0].mxu0 %v463
        %v531 = vpop.f32.mrb[0].mxu0
        %v532 = vadd.f32 0.0, %v531
        %v533 = vpop.f32.mrb[0].mxu0
        %v534 = vadd.f32 0.0, %v533
        %535 = vdwg.mxu0
        %v536 = vld [vmem:[%s2] sm:$0xf]
        %539 = vrot.lane.b32.xlu0 %v532, 48
        %v540 = vpop.permute.xlu0 %539
        %541 = vrot.lane.b32.xlu0 %v534, 48
        %v542 = vpop.permute.xlu0 %541
        %vm543 = vcmask 392192
        %v544 = vsel %vm543, %v540, %v542
        %v548 = vsel %vm543, 0.0, %v540
        %v549 = vsel %vm543, %v542, 0.0
        %v552 = vrot.slane %v548, 4
        %v553 = vrot.slane %v544, 4
        %v554 = vrot.slane %v549, 4
        %555 = vrot.lane.b32.xlu0 %v552, 112
        %v556 = vpop.permute.xlu0 %555
        %557 = vrot.lane.b32.xlu0 %v553, 112
        %v558 = vpop.permute.xlu0 %557
        %559 = vrot.lane.b32.xlu0 %v554, 112
        %v560 = vpop.permute.xlu0 %559
        %vm561 = vcmask 916480
        %v562 = vsel %vm561, %v556, %v558
        %v563 = vsel %vm561, %v558, %v560
        %566 = vrot.lane.b32.xlu0 %v548, 96
        %v567 = vpop.permute.xlu0 %566
        %568 = vrot.lane.b32.xlu0 %v544, 96
        %v569 = vpop.permute.xlu0 %568
        %570 = vrot.lane.b32.xlu0 %v549, 96
        %v571 = vpop.permute.xlu0 %570
        %vm572 = vcmask 785408
        %v573 = vsel %vm572, %v567, %v569
        %v574 = vsel %vm572, %v569, %v571
        %577 = vrot.lane.b32.xlu0 %v552, 80
        %v578 = vpop.permute.xlu0 %577
        %579 = vrot.lane.b32.xlu0 %v553, 80
        %v580 = vpop.permute.xlu0 %579
        %581 = vrot.lane.b32.xlu0 %v554, 80
        %v582 = vpop.permute.xlu0 %581
        %vm583 = vcmask 654336
        %v584 = vsel %vm583, %v578, %v580
        %v585 = vsel %vm583, %v580, %v582
        %588 = vrot.lane.b32.xlu0 %v548, 64
        %v589 = vpop.permute.xlu0 %588
        %590 = vrot.lane.b32.xlu0 %v544, 64
        %v591 = vpop.permute.xlu0 %590
        %592 = vrot.lane.b32.xlu0 %v549, 64
        %v593 = vpop.permute.xlu0 %592
        %vm594 = vcmask 523264
        %v595 = vsel %vm594, %v589, %v591
        %v596 = vsel %vm594, %v591, %v593
        %599 = vrot.lane.b32.xlu0 %v552, 48
        %v600 = vpop.permute.xlu0 %599
        %601 = vrot.lane.b32.xlu0 %v553, 48
        %v602 = vpop.permute.xlu0 %601
        %603 = vrot.lane.b32.xlu0 %v554, 48
        %v604 = vpop.permute.xlu0 %603
        %v605 = vsel %vm543, %v600, %v602
        %v606 = vsel %vm543, %v602, %v604
        %609 = vrot.lane.b32.xlu0 %v548, 32
        %v610 = vpop.permute.xlu0 %609
        %611 = vrot.lane.b32.xlu0 %v544, 32
        %v612 = vpop.permute.xlu0 %611
        %613 = vrot.lane.b32.xlu0 %v549, 32
        %v614 = vpop.permute.xlu0 %613
        %vm615 = vcmask 261120
        %v616 = vsel %vm615, %v610, %v612
        %v617 = vsel %vm615, %v612, %v614
        %vm618 = vcmask 1043456
        %v619 = vsel %vm618, %v548, %v562
        %v620 = vsel %vm618, %v544, %v563
        %v621 = vsel %vm618, %v573, %v584
        %v622 = vsel %vm618, %v574, %v585
        %v623 = vsel %vm618, %v595, %v605
        %v624 = vsel %vm618, %v596, %v606
        %vm625 = vcmask 228352
        %v627 = vsel %vm625, %v536, 0
        %v629 = vsel %vm618, %v616, 0
        %v631 = vsel %vm618, %v617, 0
        %633 = vmatprep.subr.mxu0 %v620
        %634 = vmatpush1.msra.mxu0 %v619
        %635 = vmatprep.subr.mxu0 %v622
        %636 = vmatpush1.msra.mxu0 %v621
        %637 = vmatprep.subr.mxu0 %v624
        %638 = vmatpush1.msra.mxu0 %v623
        %639 = vmatprep.subr.mxu0 %v631
        %640 = vmatpush1.msra.mxu0 %v629
        %641 = vmatprep.subr.mxu0 0.0
        %642 = vmatpush1.msra.mxu0 0.0
        %643 = vmatprep.subr.mxu0 0.0
        %644 = vmatpush1.msra.mxu0 0.0
        %645 = vmatprep.subr.mxu0 0.0
        %646 = vmatpush1.msra.mxu0 0.0
        %647 = vmatprep.subr.mxu0 0.0
        %648 = vmatpush1.msra.mxu0 0.0
        %649 = vmatprep.subr.mxu0 0.0
        %650 = vmatpush1.msra.mxu0 0.0
        %651 = vmatprep.subr.mxu0 0.0
        %652 = vmatpush1.msra.mxu0 0.0
        %653 = vmatprep.subr.mxu0 0.0
        %654 = vmatpush1.msra.mxu0 0.0
        %655 = vmatprep.subr.mxu0 0.0
        %656 = vmatpush1.msra.mxu0 0.0
        %657 = vmatprep.subr.mxu0 0.0
        %658 = vmatpush1.msra.mxu0 0.0
        %659 = vmatprep.subr.mxu0 0.0
        %660 = vmatpush1.msra.mxu0 0.0
        %661 = vmatprep.subr.mxu0 0.0
        %662 = vmatpush1.msra.mxu0 0.0
        %663 = vmatprep.subr.mxu0 0.0
        %664 = vmatpush1.msra.mxu0 0.0
        %665 = vmatprep.subr.mxu0 0.0
        %666 = vmatpush1.msra.mxu0 0.0
        %667 = vmatprep.subr.mxu0 0.0
        %668 = vmatpush1.msra.mxu0 0.0
        %669 = vmatprep.subr.mxu0 0.0
        %670 = vmatpush1.msra.mxu0 0.0
        %671 = vmatprep.subr.mxu0 0.0
        %672 = vmatpush1.msra.mxu0 0.0
        %673 = vmatprep.subr.mxu0 0.0
        %674 = vmatpush1.msra.mxu0 0.0
        %675 = vmatprep.subr.mxu0 0.0
        %676 = vmatpush1.msra.mxu0 0.0
        %677 = vmatprep.subr.mxu0 0.0
        %678 = vmatpush1.msra.mxu0 0.0
        %679 = vmatprep.subr.mxu0 0.0
        %680 = vmatpush1.msra.mxu0 0.0
        %681 = vmatprep.subr.mxu0 0.0
        %682 = vmatpush1.msra.mxu0 0.0
        %683 = vmatprep.subr.mxu0 0.0
        %684 = vmatpush1.msra.mxu0 0.0
        %685 = vmatprep.subr.mxu0 0.0
        %686 = vmatpush1.msra.mxu0 0.0
        %687 = vmatprep.subr.mxu0 0.0
        %688 = vmatpush1.msra.mxu0 0.0
        %689 = vmatprep.subr.mxu0 0.0
        %690 = vmatpush1.msra.mxu0 0.0
        %691 = vmatprep.subr.mxu0 0.0
        %692 = vmatpush1.msra.mxu0 0.0
        %693 = vmatprep.subr.mxu0 0.0
        %694 = vmatpush1.msra.mxu0 0.0
        %695 = vmatprep.subr.mxu0 0.0
        %696 = vmatpush1.msra.mxu0 0.0
        %697 = vmatprep.mubr.f32.mxu0 0.0
        %698 = vmatmul.mubr.f32.gmra.mrb[0].mxu0 %v627
        %v699 = vpop.f32.mrb[0].mxu0
        %v700 = vadd.f32 0.0, %v699
        %v701 = vpop.f32.mrb[0].mxu0
        %v702 = vadd.f32 0.0, %v701
        %703 = vdwg.mxu0
        %v706 = vcombine.low %v700, %v702
        %708 = vst [vmem:[%s253] sm:$0xff] %v706
        %v709 = vld [vmem:[%s3] sm:$0xf]
        %710 = vrot.lane.b32.xlu0 %v254, 48
        %v711 = vpop.permute.xlu0 %710
        %712 = vrot.lane.b32.xlu0 %v255, 48
        %v713 = vpop.permute.xlu0 %712
        %v714 = vsel %vm543, %v711, %v713
        %v718 = vsel %vm543, 0.0, %v711
        %v719 = vsel %vm543, %v713, 0.0
        %722 = vrot.lane.b32.xlu0 %v718, 112
        %v723 = vpop.permute.xlu0 %722
        %724 = vrot.lane.b32.xlu0 %v714, 112
        %v725 = vpop.permute.xlu0 %724
        %726 = vrot.lane.b32.xlu0 %v719, 112
        %v727 = vpop.permute.xlu0 %726
        %v728 = vsel %vm561, %v723, %v725
        %v729 = vsel %vm561, %v725, %v727
        %732 = vrot.lane.b32.xlu0 %v718, 96
        %v733 = vpop.permute.xlu0 %732
        %734 = vrot.lane.b32.xlu0 %v714, 96
        %v735 = vpop.permute.xlu0 %734
        %736 = vrot.lane.b32.xlu0 %v719, 96
        %v737 = vpop.permute.xlu0 %736
        %v738 = vsel %vm572, %v733, %v735
        %v739 = vsel %vm572, %v735, %v737
        %742 = vrot.lane.b32.xlu0 %v718, 80
        %v743 = vpop.permute.xlu0 %742
        %744 = vrot.lane.b32.xlu0 %v714, 80
        %v745 = vpop.permute.xlu0 %744
        %746 = vrot.lane.b32.xlu0 %v719, 80
        %v747 = vpop.permute.xlu0 %746
        %v748 = vsel %vm583, %v743, %v745
        %v749 = vsel %vm583, %v745, %v747
        %752 = vrot.lane.b32.xlu0 %v718, 64
        %v753 = vpop.permute.xlu0 %752
        %754 = vrot.lane.b32.xlu0 %v714, 64
        %v755 = vpop.permute.xlu0 %754
        %756 = vrot.lane.b32.xlu0 %v719, 64
        %v757 = vpop.permute.xlu0 %756
        %v758 = vsel %vm594, %v753, %v755
        %v759 = vsel %vm594, %v755, %v757
        %762 = vrot.lane.b32.xlu0 %v718, 48
        %v763 = vpop.permute.xlu0 %762
        %764 = vrot.lane.b32.xlu0 %v714, 48
        %v765 = vpop.permute.xlu0 %764
        %766 = vrot.lane.b32.xlu0 %v719, 48
        %v767 = vpop.permute.xlu0 %766
        %v768 = vsel %vm543, %v763, %v765
        %v769 = vsel %vm543, %v765, %v767
        %772 = vrot.lane.b32.xlu0 %v718, 32
        %v773 = vpop.permute.xlu0 %772
        %774 = vrot.lane.b32.xlu0 %v714, 32
        %v775 = vpop.permute.xlu0 %774
        %776 = vrot.lane.b32.xlu0 %v719, 32
        %v777 = vpop.permute.xlu0 %776
        %v778 = vsel %vm615, %v773, %v775
        %v779 = vsel %vm615, %v775, %v777
        %v783 = vsel %vm461, %v709, 0
        %785 = vmatprep.subr.mxu0 %v714
        %786 = vmatpush1.msra.mxu0 %v718
        %787 = vmatprep.subr.mxu0 %v729
        %788 = vmatpush1.msra.mxu0 %v728
        %789 = vmatprep.subr.mxu0 %v739
        %790 = vmatpush1.msra.mxu0 %v738
        %791 = vmatprep.subr.mxu0 %v749
        %792 = vmatpush1.msra.mxu0 %v748
        %793 = vmatprep.subr.mxu0 %v759
        %794 = vmatpush1.msra.mxu0 %v758
        %795 = vmatprep.subr.mxu0 %v769
        %796 = vmatpush1.msra.mxu0 %v768
        %797 = vmatprep.subr.mxu0 %v779
        %798 = vmatpush1.msra.mxu0 %v778
        %799 = vmatprep.subr.mxu0 0.0
        %800 = vmatpush1.msra.mxu0 0.0
        %801 = vmatprep.subr.mxu0 0.0
        %802 = vmatpush1.msra.mxu0 0.0
        %803 = vmatprep.subr.mxu0 0.0
        %804 = vmatpush1.msra.mxu0 0.0
        %805 = vmatprep.subr.mxu0 0.0
        %806 = vmatpush1.msra.mxu0 0.0
        %807 = vmatprep.subr.mxu0 0.0
        %808 = vmatpush1.msra.mxu0 0.0
        %809 = vmatprep.subr.mxu0 0.0
        %810 = vmatpush1.msra.mxu0 0.0
        %811 = vmatprep.subr.mxu0 0.0
        %812 = vmatpush1.msra.mxu0 0.0
        %813 = vmatprep.subr.mxu0 0.0
        %814 = vmatpush1.msra.mxu0 0.0
        %815 = vmatprep.subr.mxu0 0.0
        %816 = vmatpush1.msra.mxu0 0.0
        %817 = vmatprep.subr.mxu0 0.0
        %818 = vmatpush1.msra.mxu0 0.0
        %819 = vmatprep.subr.mxu0 0.0
        %820 = vmatpush1.msra.mxu0 0.0
        %821 = vmatprep.subr.mxu0 0.0
        %822 = vmatpush1.msra.mxu0 0.0
        %823 = vmatprep.subr.mxu0 0.0
        %824 = vmatpush1.msra.mxu0 0.0
        %825 = vmatprep.subr.mxu0 0.0
        %826 = vmatpush1.msra.mxu0 0.0
        %827 = vmatprep.subr.mxu0 0.0
        %828 = vmatpush1.msra.mxu0 0.0
        %829 = vmatprep.subr.mxu0 0.0
        %830 = vmatpush1.msra.mxu0 0.0
        %831 = vmatprep.subr.mxu0 0.0
        %832 = vmatpush1.msra.mxu0 0.0
        %833 = vmatprep.subr.mxu0 0.0
        %834 = vmatpush1.msra.mxu0 0.0
        %835 = vmatprep.subr.mxu0 0.0
        %836 = vmatpush1.msra.mxu0 0.0
        %837 = vmatprep.subr.mxu0 0.0
        %838 = vmatpush1.msra.mxu0 0.0
        %839 = vmatprep.subr.mxu0 0.0
        %840 = vmatpush1.msra.mxu0 0.0
        %841 = vmatprep.subr.mxu0 0.0
        %842 = vmatpush1.msra.mxu0 0.0
        %843 = vmatprep.subr.mxu0 0.0
        %844 = vmatpush1.msra.mxu0 0.0
        %845 = vmatprep.subr.mxu0 0.0
        %846 = vmatpush1.msra.mxu0 0.0
        %847 = vmatprep.subr.mxu0 0.0
        %848 = vmatpush1.msra.mxu0 0.0
        %849 = vmatprep.mubr.f32.mxu0 0.0
        %850 = vmatmul.mubr.f32.gmra.mrb[0].mxu0 %v783
        %v851 = vpop.f32.mrb[0].mxu0
        %v852 = vadd.f32 0.0, %v851
        %v853 = vpop.f32.mrb[0].mxu0
        %v854 = vadd.f32 0.0, %v853
        %855 = vdwg.mxu0
        %v856 = vld [vmem:[%s253] sm:$0xff]
        %v857 = vld [vmem:[%s4] sm:$0xf]
        %860 = vrot.lane.b32.xlu0 %v852, 3
        %v861 = vpop.permute.xlu0 %860
        %862 = vrot.lane.b32.xlu0 %v854, 3
        %v863 = vpop.permute.xlu0 %862
        %v864 = vsel %vm290, %v861, %v863
        %v868 = vsel %vm290, 0.0, %v861
        %v869 = vsel %vm290, %v863, 0.0
        %v870 = vsel %vm307, %v868, 0.0
        %v871 = vsel %vm308, %v864, 0.0
        %874 = vrot.lane.b32.xlu0 %v868, 127
        %v875 = vpop.permute.xlu0 %874
        %876 = vrot.lane.b32.xlu0 %v864, 127
        %v877 = vpop.permute.xlu0 %876
        %878 = vrot.lane.b32.xlu0 %v869, 127
        %v879 = vpop.permute.xlu0 %878
        %v880 = vsel %vm331, %v875, %v877
        %v881 = vsel %vm331, %v877, %v879
        %v884 = vsel %vm321, %v880, 0.0
        %v885 = vsel %vm322, %v881, 0.0
        %886 = vrot.lane.b32.xlu0 %v868, 126
        %v887 = vpop.permute.xlu0 %886
        %888 = vrot.lane.b32.xlu0 %v864, 126
        %v889 = vpop.permute.xlu0 %888
        %890 = vrot.lane.b32.xlu0 %v869, 126
        %v891 = vpop.permute.xlu0 %890
        %v892 = vsel %vm356, %v887, %v889
        %v893 = vsel %vm356, %v889, %v891
        %v896 = vsel %vm348, %v892, 0.0
        %v897 = vsel %vm349, %v893, 0.0
        %898 = vrot.lane.b32.xlu0 %v868, 125
        %v899 = vpop.permute.xlu0 %898
        %900 = vrot.lane.b32.xlu0 %v864, 125
        %v901 = vpop.permute.xlu0 %900
        %902 = vrot.lane.b32.xlu0 %v869, 125
        %v903 = vpop.permute.xlu0 %902
        %v904 = vsel %vm379, %v899, %v901
        %v905 = vsel %vm379, %v901, %v903
        %v908 = vsel %vm371, %v904, 0.0
        %v909 = vsel %vm372, %v905, 0.0
        %910 = vrot.lane.b32.xlu0 %v868, 124
        %v911 = vpop.permute.xlu0 %910
        %912 = vrot.lane.b32.xlu0 %v864, 124
        %v913 = vpop.permute.xlu0 %912
        %914 = vrot.lane.b32.xlu0 %v869, 124
        %v915 = vpop.permute.xlu0 %914
        %v916 = vsel %vm404, %v911, %v913
        %v917 = vsel %vm404, %v913, %v915
        %v920 = vsel %vm396, %v916, 0.0
        %v921 = vsel %vm397, %v917, 0.0
        %922 = vrot.lane.b32.xlu0 %v868, 123
        %v923 = vpop.permute.xlu0 %922
        %924 = vrot.lane.b32.xlu0 %v864, 123
        %v925 = vpop.permute.xlu0 %924
        %926 = vrot.lane.b32.xlu0 %v869, 123
        %v927 = vpop.permute.xlu0 %926
        %v928 = vsel %vm429, %v923, %v925
        %v929 = vsel %vm429, %v925, %v927
        %v932 = vsel %vm421, %v928, 0.0
        %v933 = vsel %vm422, %v929, 0.0
        %934 = vrot.lane.b32.xlu0 %v868, 122
        %v935 = vpop.permute.xlu0 %934
        %936 = vrot.lane.b32.xlu0 %v864, 122
        %v937 = vpop.permute.xlu0 %936
        %938 = vrot.lane.b32.xlu0 %v869, 122
        %v939 = vpop.permute.xlu0 %938
        %v940 = vsel %vm454, %v935, %v937
        %v941 = vsel %vm454, %v937, %v939
        %v944 = vsel %vm446, %v940, 0.0
        %v945 = vsel %vm447, %v941, 0.0
        %v948 = vrot.slane %v884, 4
        %v949 = vrot.slane %v885, 4
        %v954 = vrot.slane %v908, 4
        %v955 = vrot.slane %v909, 4
        %v960 = vrot.slane %v932, 4
        %v961 = vrot.slane %v933, 4
        %v964 = vsel %vm618, %v870, %v948
        %v965 = vsel %vm618, %v871, %v949
        %v966 = vsel %vm618, %v896, %v954
        %v967 = vsel %vm618, %v897, %v955
        %v968 = vsel %vm618, %v920, %v960
        %v969 = vsel %vm618, %v921, %v961
        %v971 = vsel %vm625, %v857, 0
        %v974 = vsel %vm618, %v944, 0
        %v977 = vsel %vm618, %v945, 0
        %979 = vmatprep.subr.mxu0 %v965
        %980 = vmatpush1.msra.mxu0 %v964
        %981 = vmatprep.subr.mxu0 %v967
        %982 = vmatpush1.msra.mxu0 %v966
        %983 = vmatprep.subr.mxu0 %v969
        %984 = vmatpush1.msra.mxu0 %v968
        %985 = vmatprep.subr.mxu0 %v977
        %986 = vmatpush1.msra.mxu0 %v974
        %987 = vmatprep.subr.mxu0 0.0
        %988 = vmatpush1.msra.mxu0 0.0
        %989 = vmatprep.subr.mxu0 0.0
        %990 = vmatpush1.msra.mxu0 0.0
        %991 = vmatprep.subr.mxu0 0.0
        %992 = vmatpush1.msra.mxu0 0.0
        %993 = vmatprep.subr.mxu0 0.0
        %994 = vmatpush1.msra.mxu0 0.0
        %995 = vmatprep.subr.mxu0 0.0
        %996 = vmatpush1.msra.mxu0 0.0
        %997 = vmatprep.subr.mxu0 0.0
        %998 = vmatpush1.msra.mxu0 0.0
        %999 = vmatprep.subr.mxu0 0.0
        %1000 = vmatpush1.msra.mxu0 0.0
        %1001 = vmatprep.subr.mxu0 0.0
        %1002 = vmatpush1.msra.mxu0 0.0
        %1003 = vmatprep.subr.mxu0 0.0
        %1004 = vmatpush1.msra.mxu0 0.0
        %1005 = vmatprep.subr.mxu0 0.0
        %1006 = vmatpush1.msra.mxu0 0.0
        %1007 = vmatprep.subr.mxu0 0.0
        %1008 = vmatpush1.msra.mxu0 0.0
        %1009 = vmatprep.subr.mxu0 0.0
        %1010 = vmatpush1.msra.mxu0 0.0
        %1011 = vmatprep.subr.mxu0 0.0
        %1012 = vmatpush1.msra.mxu0 0.0
        %1013 = vmatprep.subr.mxu0 0.0
        %1014 = vmatpush1.msra.mxu0 0.0
        %1015 = vmatprep.subr.mxu0 0.0
        %1016 = vmatpush1.msra.mxu0 0.0
        %1017 = vmatprep.subr.mxu0 0.0
        %1018 = vmatpush1.msra.mxu0 0.0
        %1019 = vmatprep.subr.mxu0 0.0
        %1020 = vmatpush1.msra.mxu0 0.0
        %1021 = vmatprep.subr.mxu0 0.0
        %1022 = vmatpush1.msra.mxu0 0.0
        %1023 = vmatprep.subr.mxu0 0.0
        %1024 = vmatpush1.msra.mxu0 0.0
        %1025 = vmatprep.subr.mxu0 0.0
        %1026 = vmatpush1.msra.mxu0 0.0
        %1027 = vmatprep.subr.mxu0 0.0
        %1028 = vmatpush1.msra.mxu0 0.0
        %1029 = vmatprep.subr.mxu0 0.0
        %1030 = vmatpush1.msra.mxu0 0.0
        %1031 = vmatprep.subr.mxu0 0.0
        %1032 = vmatpush1.msra.mxu0 0.0
        %1033 = vmatprep.subr.mxu0 0.0
        %1034 = vmatpush1.msra.mxu0 0.0
        %1035 = vmatprep.subr.mxu0 0.0
        %1036 = vmatpush1.msra.mxu0 0.0
        %1037 = vmatprep.subr.mxu0 0.0
        %1038 = vmatpush1.msra.mxu0 0.0
        %1039 = vmatprep.subr.mxu0 0.0
        %1040 = vmatpush1.msra.mxu0 0.0
        %1041 = vmatprep.subr.mxu0 0.0
        %1042 = vmatpush1.msra.mxu0 0.0
        %1043 = vmatprep.mubr.f32.mxu0 0.0
        %1044 = vmatmul.mubr.f32.gmra.mrb[0].mxu0 %v971
        %v1045 = vpop.f32.mrb[0].mxu0
        %v1046 = vadd.f32 0.0, %v1045
        %v1047 = vpop.f32.mrb[0].mxu0
        %v1048 = vadd.f32 0.0, %v1047
        %1049 = vdwg.mxu0
        %v1052 = vcombine.low %v1046, %v1048
        %v1054 = vadd.f32 %v856, %v1052
        %1055 = vst [vmem:[%s253] sm:$0xff] %v1054
        %s1056 = sand.u32 %s141, 1
        %s1057 = scalar_lea.sflag [#allocation4], %s1056
        %s1058 = sand.u32 %s141, 1
        %s1059 = smul.addr %s1058, 8
        %s1060 = scalar_lea.vmem [#allocation7], %s1059
        // Predicated region
        $region49: #{tpu_custom_call.1} parent=39 // pred_check
          %p1061 = pneg %p151
        $region50: #{tpu_custom_call.1} parent=39 // pred_check_branch
          %1063 = sbr.rel (%p1061) target = $region52
        $region51: #{tpu_custom_call.1} parent=39 // pred_region
          %s1065 = ssub.s32 128, 128
          %1066 = vsyncadd %s1057, %s1065
          %s1067 = smul.addr %s23, 2
          %s1068 = smul.addr %s1067, 64
          %s1069 = scalar_lea.hbm %s5, %s1068
          %s1071 = sshll.u32 %s1060, 4
          %s1072 = int_to_ptr.vmem [resolvable:$true] %s1071
          %1074 = dma.vmem_to_hbm [thread:$0]  %s1072, 128, %s1069, %s1057
        $region52: #{tpu_custom_call.1} parent=39 // pred_fallthru
          _
      $region40: #{tpu_custom_call.1} parent=5 // pred_fallthru
        _
      %p1075 = scmp.le.s32.totalorder 2, %s18
      // Predicated region
      $region53: #{tpu_custom_call.1} parent=5 // pred_check
        %p1076 = pneg %p1075
      $region54: #{tpu_custom_call.1} parent=5 // pred_check_branch
        %1078 = sbr.rel (%p1076) target = $region56
      $region55: #{tpu_custom_call.1} parent=5 // pred_region
        %s1079 = ssub.s32 %s18, 2
        // Predicated region
        $region57: #{tpu_custom_call.1} parent=55 // pred_check
          %p1080 = pneg %p157
        $region58: #{tpu_custom_call.1} parent=55 // pred_check_branch
          %1082 = sbr.rel (%p1080) target = $region60
        $region59: #{tpu_custom_call.1} parent=55 // pred_region
          %s1083 = sand.u32 %s142, 1
          %s1084 = scalar_lea.sflag [#allocation4], %s1083
          %s1085 = sand.u32 %s142, 1
          %s1086 = smul.addr %s1085, 8
          %s1087 = scalar_lea.vmem [#allocation7], %s1086
          %1088 = dma.done %s1084, 128
        $region60: #{tpu_custom_call.1} parent=55 // pred_fallthru
          _
      $region56: #{tpu_custom_call.1} parent=5 // pred_fallthru
        _
    $region6: #{tpu_custom_call.1} parent=1 // loop_footer
      %s22 = sadd.s32 1, %s18
    $region7: #{tpu_custom_call.1} parent=1 // loop_footer_branch
      %17 = sbr.rel target = $region3
    $region8: #{tpu_custom_call.1} parent=1 // loop_exit
      _
    %1089 = vsyncpa [#allocation3], 1
    %s1090 = scalar_lea.sflag [#allocation3], 1
    %1091 = vsyncpa %s1090, 1
    %1092 = vsyncpa [#allocation6], 1
    %1093 = vsyncpa [#allocation4], 1
    %s1094 = scalar_lea.sflag [#allocation4], 1
    %1095 = vsyncpa %s1094, 1

</llo_original>
